<compile_context>
chip_gen: v7x
topology: tpu7x:2x2x1
jax: 0.10.0
libtpu: 0.0.40
codegen_flags: <defaults>
</compile_context>

<pallas_src>
import jax
import jax.numpy as jnp
from jax import lax
from jax.experimental import pallas as pl
from jax.experimental.pallas import tpu as pltpu

NUM_HEADS = 8          # matches the d2l example (num_heads=8, num_hiddens=24)
LN_EPS = 1e-5
NEG_INF = -1e6
LANE = 128
MXU_DTYPE = jnp.bfloat16


def _round_up(n, m):
    return (n + m - 1) // m * m


# ----------------------------------------------------------------------------
# Host-side static helpers (masks are built once, outside the kernel).
# ----------------------------------------------------------------------------
def _head_mask(nh, sk, Hp, hd_p):
    """(nh*sk, Hp): row block h keeps only head h's feature columns."""
    row_head = jnp.arange(nh * sk, dtype=jnp.int32) // sk
    col_head = jnp.arange(Hp, dtype=jnp.int32) // hd_p
    return (row_head[:, None] == col_head[None, :]).astype(jnp.float32)


def _seg_ones(nh, sk):
    """(nh*sk, nh*sk) block-diagonal ones: per-head softmax-denominator broadcast."""
    seg = jnp.arange(nh * sk, dtype=jnp.int32) // sk
    return (seg[:, None] == seg[None, :]).astype(jnp.float32)


# ----------------------------------------------------------------------------
# Host-side parameter packing (done once).
# ----------------------------------------------------------------------------
def pack_params(params, H, Fh, num_heads):
    """Pad + pack the raw f32 params into lane-dense slabs for the kernel."""
    Hp = _round_up(H, LANE)
    Fp = _round_up(Fh, LANE)
    assert H % num_heads == 0 and Hp % num_heads == 0
    hd = H // num_heads
    hd_p = Hp // num_heads

    def pad_in_proj(w):          # (H, H) -> (Hp, Hp); head h -> cols [h*hd_p, h*hd_p+hd)
        w3 = w.reshape(H, num_heads, hd)
        w3 = jnp.pad(w3, ((0, Hp - H), (0, 0), (0, hd_p - hd)))
        return w3.reshape(Hp, Hp)

    def pad_out_proj(w):         # (H, H) -> (Hp, Hp); head h -> rows [h*hd_p, h*hd_p+hd)
        w3 = w.reshape(num_heads, hd, H)
        w3 = jnp.pad(w3, ((0, 0), (0, hd_p - hd), (0, Hp - H)))
        return w3.reshape(Hp, Hp)

    def pad2(w, r, c):
        return jnp.pad(w, ((0, r - w.shape[0]), (0, c - w.shape[1])))

    # Attention slab used inside the kernel: [Wq1 | Wk1 | Wv1 | Wo1 | Wq2 | Wo2].
    attn_w = jnp.concatenate(
        [pad_in_proj(params["wq1"]), pad_in_proj(params["wk1"]),
         pad_in_proj(params["wv1"]), pad_out_proj(params["wo1"]),
         pad_in_proj(params["wq2"]), pad_out_proj(params["wo2"])],
        axis=1).astype(MXU_DTYPE)                                   # (Hp, 6*Hp)

    # Cross-attention K/V projections are applied on the host (loop-invariant).
    wk2_pad = pad_in_proj(params["wk2"]).astype(MXU_DTYPE)
    wv2_pad = pad_in_proj(params["wv2"]).astype(MXU_DTYPE)

    ffn_w1 = pad2(params["w1"], Hp, Fp).astype(MXU_DTYPE)           # (Hp, Fp)
    ffn_w2 = pad2(params["w2"], Fp, Hp).astype(MXU_DTYPE)           # (Fp, Hp)

    Wv = max(Hp, Fp)

    def pad_vec(v):
        v = v.reshape(1, -1)
        return jnp.pad(v, ((0, 0), (0, Wv - v.shape[-1])))

    vecs = jnp.concatenate(
        [pad_vec(params["b1"]), pad_vec(params["b2"]),
         pad_vec(params["g1"]), pad_vec(params["be1"]),
         pad_vec(params["g2"]), pad_vec(params["be2"]),
         pad_vec(params["g3"]), pad_vec(params["be3"])],
        axis=0).astype(jnp.float32)                                  # (8, Wv)

    return dict(attn_w=attn_w, wk2_pad=wk2_pad, wv2_pad=wv2_pad,
                ffn_w1=ffn_w1, ffn_w2=ffn_w2, vecs=vecs,
                H=H, Fh=Fh, Hp=Hp, Fp=Fp, num_heads=num_heads, hd=hd, hd_p=hd_p)


# ----------------------------------------------------------------------------
# Host-side cross-attention precompute (once per encoded sequence, reused
# across all decode steps): K2/V2 projection, head expansion, K2 transpose,
# per-head segment matrix, and the enc_valid_lens additive bias.
# ----------------------------------------------------------------------------
def precompute_cross(enc_outputs, enc_valid_lens, packed):
    B, Se, H = enc_outputs.shape
    Hp, nh, hd_p = packed["Hp"], packed["num_heads"], packed["hd_p"]
    enc_p = jnp.pad(enc_outputs, ((0, 0), (0, 0), (0, Hp - H))).astype(MXU_DTYPE)
    k2 = jnp.einsum('bsd,dh->bsh', enc_p, packed["wk2_pad"],
                    preferred_element_type=jnp.float32)              # (B, Se, Hp)
    v2 = jnp.einsum('bsd,dh->bsh', enc_p, packed["wv2_pad"],
                    preferred_element_type=jnp.float32)
    mask = _head_mask(nh, Se, Hp, hd_p)                              # (nh*Se, Hp)
    k2e = jnp.broadcast_to(k2[:, None], (B, nh, Se, Hp)).reshape(B, nh * Se, Hp) * mask
    v2e = jnp.broadcast_to(v2[:, None], (B, nh, Se, Hp)).reshape(B, nh * Se, Hp) * mask
    k2t = jnp.transpose(k2e, (0, 2, 1)).astype(MXU_DTYPE)            # (B, Hp, nh*Se)
    v2e = v2e.astype(MXU_DTYPE)                                      # (B, nh*Se, Hp)
    seg2 = _seg_ones(nh, Se)                                         # (nh*Se, nh*Se)
    kpos = jnp.arange(nh * Se, dtype=jnp.int32) % Se
    bias2 = jnp.where(kpos[None, :] < enc_valid_lens.astype(jnp.int32)[:, None],
                      0.0, NEG_INF).astype(jnp.float32)
    bias2 = bias2.reshape(B, 1, nh * Se)                             # (B, 1, nh*Se)
    return dict(k2t=k2t, v2e=v2e, seg2=seg2, bias2=bias2, Se=Se)


# ----------------------------------------------------------------------------
# Kernel factory (static dims captured by closure).
# ----------------------------------------------------------------------------
def _make_kernel(bblk, Sd, Skv, Se, Hp, Fp, nh, hd, H, fuse_qkv):
    scale = 1.0 / float(hd) ** 0.5
    J1 = nh * Skv     # self-attention expanded key rows
    J2 = nh * Se      # cross-attention expanded key rows

    def layernorm(x, gamma, beta):
        # x has zeros in the padded columns; reduce with the REAL width H.
        inv_n = 1.0 / H
        mean = jnp.sum(x, axis=-1, keepdims=True) * inv_n
        msq = jnp.sum(x * x, axis=-1, keepdims=True) * inv_n
        var = msq - mean * mean
        return (x - mean) * lax.rsqrt(var + LN_EPS) * gamma + beta

    def softmax_rows(s_flat, seg):
        # Per-head softmax on flat rows: global row max is exact per head
        # (shift invariance); denominators are broadcast with one f32 matmul
        # against the static block-diagonal ones matrix.  Clamp guards NaN for
        # fully-masked / underflowed segments.
        s_flat = s_flat - jnp.max(s_flat, axis=-1, keepdims=True)
        p = jnp.exp(s_flat)
        denom = jnp.dot(p, seg, preferred_element_type=jnp.float32)
        return p * pl.reciprocal(jnp.maximum(denom, 1e-30), approx=True)

    def expand_heads(t, mask):
        # (bblk, Skv, Hp) -> (bblk, nh*Skv, Hp): one row block per head, masked
        # to that head's feature columns (static precomputed mask).
        te = jnp.broadcast_to(t[:, None], (bblk, nh, Skv, Hp)).reshape(bblk, J1, Hp)
        return (te * mask).astype(MXU_DTYPE)

    def kernel(*refs):
        if fuse_qkv:
            (x_ref, k2t_ref, v2e_ref, bias2_ref, mask1_ref, seg1_ref, seg2_ref,
             attnw_ref, w1_ref, w2_ref, vec_ref, out_ref) = refs
            kv_ref = None
        else:
            (x_ref, kv_ref, k2t_ref, v2e_ref, bias2_ref, mask1_ref, seg1_ref,
             seg2_ref, attnw_ref, w1_ref, w2_ref, vec_ref, out_ref) = refs

        # Fold the batch block into the matmul M dimension (leading-dim reshape).
        x = x_ref[...].reshape(bblk * Sd, Hp)                 # f32, zeros beyond H
        xb = x.astype(MXU_DTYPE)

        wo1 = attnw_ref[:, 3 * Hp:4 * Hp]
        wq2 = attnw_ref[:, 4 * Hp:5 * Hp]
        wo2 = attnw_ref[:, 5 * Hp:6 * Hp]
        w1 = w1_ref[...]
        w2 = w2_ref[...]
        b1, b2 = vec_ref[0:1, :Fp], vec_ref[1:2, :Hp]
        g1, be1 = vec_ref[2:3, :Hp], vec_ref[3:4, :Hp]
        g2, be2 = vec_ref[4:5, :Hp], vec_ref[5:6, :Hp]
        g3, be3 = vec_ref[6:7, :Hp], vec_ref[7:8, :Hp]
        mask1 = mask1_ref[...]                                # (J1, Hp) f32

        # ---- self-attention (dec_valid_lens is None in eval) ----
        if fuse_qkv:
            # Empty KV cache: query == key/value input -> one fused QKV matmul.
            qkv = jnp.dot(xb, attnw_ref[:, 0:3 * Hp],
                          preferred_element_type=jnp.float32)
            q1, k1, v1 = qkv[:, :Hp], qkv[:, Hp:2 * Hp], qkv[:, 2 * Hp:3 * Hp]
        else:
            kvx = kv_ref[...].reshape(bblk * Skv, Hp).astype(MXU_DTYPE)
            q1 = jnp.dot(xb, attnw_ref[:, 0:Hp], preferred_element_type=jnp.float32)
            kv = jnp.dot(kvx, attnw_ref[:, Hp:3 * Hp],
                         preferred_element_type=jnp.float32)
            k1, v1 = kv[:, :Hp], kv[:, Hp:]

        q1 = q1.reshape(bblk, Sd, Hp).astype(MXU_DTYPE)
        k1e = expand_heads(k1.reshape(bblk, Skv, Hp), mask1)  # (bblk, J1, Hp) bf16
        v1e = expand_heads(v1.reshape(bblk, Skv, Hp), mask1)
        # All heads' scores in one batched matmul (block-diagonal mask trick).
        s1 = jnp.einsum('bqd,bjd->bqj', q1, k1e,
                        preferred_element_type=jnp.float32) * scale
        a1 = softmax_rows(s1.reshape(bblk * Sd, J1), seg1_ref[...])
        a1 = a1.reshape(bblk, Sd, J1).astype(MXU_DTYPE)
        o1 = jnp.einsum('bqj,bjd->bqd', a1, v1e,
                        preferred_element_type=jnp.float32).reshape(bblk * Sd, Hp)
        x2 = jnp.dot(o1.astype(MXU_DTYPE), wo1, preferred_element_type=jnp.float32)
        y = layernorm(x2 + x, g1, be1)                         # (bblk*Sd, Hp) f32

        # ---- cross-attention: K2^T / V2 pre-projected + pre-expanded on host ----
        q2 = jnp.dot(y.astype(MXU_DTYPE), wq2, preferred_element_type=jnp.float32)
        q2 = q2.reshape(bblk, Sd, Hp).astype(MXU_DTYPE)
        # K2^T arrives already transposed -> natural NN contraction, no relayout.
        s2 = jnp.einsum('bqd,bdj->bqj', q2, k2t_ref[...],
                        preferred_element_type=jnp.float32) * scale + bias2_ref[...]
        a2 = softmax_rows(s2.reshape(bblk * Sd, J2), seg2_ref[...])
        a2 = a2.reshape(bblk, Sd, J2).astype(MXU_DTYPE)
        o2 = jnp.einsum('bqj,bjd->bqd', a2, v2e_ref[...],
                        preferred_element_type=jnp.float32).reshape(bblk * Sd, Hp)
        y2 = jnp.dot(o2.astype(MXU_DTYPE), wo2, preferred_element_type=jnp.float32)
        z = layernorm(y2 + y, g2, be2)

        # ---- position-wise FFN + AddNorm3 ----
        hidden = jnp.maximum(
            jnp.dot(z.astype(MXU_DTYPE), w1, preferred_element_type=jnp.float32) + b1,
            0.0)
        f = jnp.dot(hidden.astype(MXU_DTYPE), w2,
                    preferred_element_type=jnp.float32) + b2
        out = layernorm(f + z, g3, be3)
        out_ref[...] = out.reshape(bblk, Sd, Hp).astype(out_ref.dtype)

    return kernel


# ----------------------------------------------------------------------------
# Wrapper: DecoderBlock.forward (eval mode, block i = 0).
# ----------------------------------------------------------------------------
def decoder_block(X, state, packed, *, cross=None, batch_block=None):
    enc_outputs, enc_valid_lens, kv_cache = state
    fuse_qkv = kv_cache[0] is None
    key_values = X if fuse_qkv else jnp.concatenate([kv_cache[0], X], axis=1)
    new_state = [enc_outputs, enc_valid_lens, [key_values]]

    if cross is None:   # normally computed ONCE per sequence and reused per step
        cross = precompute_cross(enc_outputs, enc_valid_lens, packed)

    B, Sd, H = X.shape
    Skv = key_values.shape[1]
    Se = cross["Se"]
    Hp, Fp = packed["Hp"], packed["Fp"]
    nh, hd, hd_p = packed["num_heads"], packed["hd"], packed["hd_p"]
    assert H == packed["H"]
    J1, J2 = nh * Skv, nh * Se

    # Batch blocking: fold enough rows per step for M >= 256 (v6e/v7x MXU);
    # keep >= 2 grid steps for v7x's two TensorCores when B is large enough,
    # otherwise fold the whole batch into a single grid step.
    if batch_block is None:
        rows_needed = max(1, -(-256 // Sd))
        batch_block = rows_needed if B >= 2 * rows_needed else B
    batch_block = max(1, min(batch_block, B))
    while B % batch_block:
        batch_block -= 1
    # Folding via leading-dim reshape needs sublane-aligned sequence tiles.
    if batch_block > 1 and any(s % 8 for s in (Sd, Skv, Se)):
        batch_block = 1
    nblk = B // batch_block

    def pad_h(a):   # lane-dense activations (pad feature dim to Hp, host-side)
        return jnp.pad(a, ((0, 0), (0, 0), (0, Hp - a.shape[-1])))

    Xp = pad_h(X)
    mask1 = _head_mask(nh, Skv, Hp, hd_p)
    seg1 = _seg_ones(nh, Skv)

    kernel = _make_kernel(batch_block, Sd, Skv, Se, Hp, Fp, nh, hd, H, fuse_qkv)

    in_specs = [pl.BlockSpec((batch_block, Sd, Hp), lambda i: (i, 0, 0))]   # X
    inputs = [Xp]
    if not fuse_qkv:
        in_specs.append(pl.BlockSpec((batch_block, Skv, Hp), lambda i: (i, 0, 0)))
        inputs.append(pad_h(key_values))                                    # KV cache
    in_specs += [
        pl.BlockSpec((batch_block, Hp, J2), lambda i: (i, 0, 0)),   # cross K2^T (expanded)
        pl.BlockSpec((batch_block, J2, Hp), lambda i: (i, 0, 0)),   # cross V2 (expanded)
        pl.BlockSpec((batch_block, 1, J2), lambda i: (i, 0, 0)),    # enc_valid additive bias
        pl.BlockSpec((J1, Hp), lambda i: (0, 0)),                   # self head mask
        pl.BlockSpec((J1, J1), lambda i: (0, 0)),                   # self segment-ones
        pl.BlockSpec((J2, J2), lambda i: (0, 0)),                   # cross segment-ones
        pl.BlockSpec((Hp, 6 * Hp), lambda i: (0, 0)),               # attention weights
        pl.BlockSpec((Hp, Fp), lambda i: (0, 0)),                   # FFN w1
        pl.BlockSpec((Fp, Hp), lambda i: (0, 0)),                   # FFN w2
        pl.BlockSpec((8, packed["vecs"].shape[1]), lambda i: (0, 0)),  # biases + LN
    ]
    inputs += [cross["k2t"], cross["v2e"], cross["bias2"], mask1, seg1,
               cross["seg2"], packed["attn_w"], packed["ffn_w1"],
               packed["ffn_w2"], packed["vecs"]]

    out_p = pl.pallas_call(
        kernel,
        out_shape=jax.ShapeDtypeStruct((B, Sd, Hp), jnp.bfloat16),   # bf16 writeback
        grid=(nblk,),
        in_specs=in_specs,
        out_specs=pl.BlockSpec((batch_block, Sd, Hp), lambda i: (i, 0, 0)),
        compiler_params=pltpu.CompilerParams(dimension_semantics=("parallel",)),
    )(*inputs)

    return out_p[:, :, :H].astype(jnp.float32), new_state


# ----------------------------------------------------------------------------
# Raw (unpacked) parameter init + pure-JAX reference of the same forward.
# ----------------------------------------------------------------------------
def init_params(key, H, Fh):
    keys = jax.random.split(key, 12)
    s = 0.1
    p = {}
    attn_names = ["wq1", "wk1", "wv1", "wo1", "wq2", "wk2", "wv2", "wo2"]
    for i, n in enumerate(attn_names):        # MultiHeadAttention linears (bias=False)
        p[n] = s * jax.random.normal(keys[i], (H, H), jnp.float32)
    p["w1"] = s * jax.random.normal(keys[8], (H, Fh), jnp.float32)   # FFN dense1
    p["b1"] = s * jax.random.normal(keys[9], (1, Fh), jnp.float32)
    p["w2"] = s * jax.random.normal(keys[10], (Fh, H), jnp.float32)  # FFN dense2
    p["b2"] = s * jax.random.normal(keys[11], (1, H), jnp.float32)
    for g, be in [("g1", "be1"), ("g2", "be2"), ("g3", "be3")]:      # LayerNorm params
        p[g] = jnp.ones((1, H), jnp.float32)
        p[be] = jnp.zeros((1, H), jnp.float32)
    return p


def _mm(a, b):
    # Same precision policy as the kernel: bf16 operands, f32 accumulation.
    return jnp.dot(a.astype(MXU_DTYPE), b.astype(MXU_DTYPE),
                   preferred_element_type=jnp.float32)


def _ref_layernorm(x, gamma, beta):
    mean = jnp.mean(x, axis=-1, keepdims=True)
    xc = x - mean
    var = jnp.mean(xc * xc, axis=-1, keepdims=True)
    return xc * lax.rsqrt(var + LN_EPS) * gamma + beta


def _ref_mha(q_in, k_in, v_in, wq, wk, wv, wo, valid_len, num_heads):
    sq, H = q_in.shape
    sk = k_in.shape[0]
    hd = H // num_heads
    q, k, v = _mm(q_in, wq), _mm(k_in, wk), _mm(v_in, wv)
    scale = 1.0 / float(hd) ** 0.5
    outs = []
    for h in range(num_heads):
        qh = q[:, h * hd:(h + 1) * hd]
        kh = k[:, h * hd:(h + 1) * hd]
        vh = v[:, h * hd:(h + 1) * hd]
        s = _mm(qh, kh.T) * scale
        if valid_len is not None:
            col = lax.broadcasted_iota(jnp.int32, (sq, sk), 1)
            s = jnp.where(col < valid_len, s, NEG_INF)
        s = s - jnp.max(s, axis=-1, keepdims=True)
        p = jnp.exp(s)
        attn = p / jnp.sum(p, axis=-1, keepdims=True)
        outs.append(_mm(attn, vh))
    return _mm(jnp.concatenate(outs, axis=-1), wo)


def reference_forward(X, key_values, enc, enc_valid, p, num_heads):
    outs = []
    for b in range(X.shape[0]):
        x, kv, e, ev = X[b], key_values[b], enc[b], enc_valid[b]
        x2 = _ref_mha(x, kv, kv, p["wq1"], p["wk1"], p["wv1"], p["wo1"], None, num_heads)
        y = _ref_layernorm(x2 + x, p["g1"], p["be1"])
        y2 = _ref_mha(y, e, e, p["wq2"], p["wk2"], p["wv2"], p["wo2"], ev, num_heads)
        z = _ref_layernorm(y2 + y, p["g2"], p["be2"])
        hdn = jnp.maximum(_mm(z, p["w1"]) + p["b1"], 0.0)
        f = _mm(hdn, p["w2"]) + p["b2"]
        outs.append(_ref_layernorm(f + z, p["g3"], p["be3"]))
    return jnp.stack(outs, axis=0)


if __name__ == "__main__":
    # batch, dec seq, enc seq, num_hiddens, ffn_hiddens (small, module-consistent)
    B, Sd, Se, H, Fh = 2, 8, 16, 24, 48
    key = jax.random.PRNGKey(0)
    kx1, kx2, kenc, kp = jax.random.split(key, 4)

    X1 = jax.random.normal(kx1, (B, Sd, H), jnp.float32)
    X2 = jax.random.normal(kx2, (B, Sd, H), jnp.float32)
    enc_outputs = jax.random.normal(kenc, (B, Se, H), jnp.float32)  # stand-in for EncoderBlock output
    enc_valid_lens = jnp.array([3, 2], dtype=jnp.int32)

    params = init_params(kp, H, Fh)
    packed = pack_params(params, H, Fh, NUM_HEADS)                  # host-side, once
    cross = precompute_cross(enc_outputs, enc_valid_lens, packed)   # once per sequence

    # decode step 1: empty KV cache (key_values == X) -> fused QKV path
    state = [enc_outputs, enc_valid_lens, [None]]                   # block index i = 0
    out1, state = decoder_block(X1, state, packed, cross=cross)
    # decode step 2: cache present -> concat(kv_cache, X), separate Q projection
    out2, state = decoder_block(X2, state, packed, cross=cross)
    out1 = jax.block_until_ready(out1)
    out2 = jax.block_until_ready(out2)

    assert out1.shape == (B, Sd, H) and out2.shape == (B, Sd, H)
    ref1 = reference_forward(X1, X1, enc_outputs, enc_valid_lens, params, NUM_HEADS)
    kv_full = jnp.concatenate([X1, X2], axis=1)
    ref2 = reference_forward(X2, kv_full, enc_outputs, enc_valid_lens, params, NUM_HEADS)
    err1 = float(jnp.max(jnp.abs(out1 - ref1)))
    err2 = float(jnp.max(jnp.abs(out2 - ref2)))
    # Tolerance covers bf16 MXU operands, bf16 output writeback and the
    # approximate (EUP) reciprocal in the softmax normalization.
    assert err1 < 3e-2 and err2 < 3e-2, f"kernel/reference mismatch: {err1} {err2}"
    print("KERNEL_OK")
</pallas_src>

<mosaic_0001>
module attributes {stable_mosaic.version = 11 : i64} {
  func.func @kernel(%arg0: i32, %arg1: memref<2x8x128xf32, #tpu.memory_space<vmem>>, %arg2: memref<2x128x128xbf16, #tpu.memory_space<vmem>>, %arg3: memref<2x128x128xbf16, #tpu.memory_space<vmem>>, %arg4: memref<2x1x128xf32, #tpu.memory_space<vmem>>, %arg5: memref<64x128xf32, #tpu.memory_space<vmem>>, %arg6: memref<64x64xf32, #tpu.memory_space<vmem>>, %arg7: memref<128x128xf32, #tpu.memory_space<vmem>>, %arg8: memref<128x768xbf16, #tpu.memory_space<vmem>>, %arg9: memref<128x128xbf16, #tpu.memory_space<vmem>>, %arg10: memref<128x128xbf16, #tpu.memory_space<vmem>>, %arg11: memref<8x128xf32, #tpu.memory_space<vmem>>, %arg12: memref<2x8x128xbf16, #tpu.memory_space<vmem>>) attributes {dimension_semantics = [#tpu.dimension_semantics<parallel>], iteration_bounds = array<i64: 1>, scalar_prefetch = 0 : i64, scratch_operands = 0 : i64, tpu.core_type = #tpu.core_type<tc>, window_params = [{transform_indices = @transform_0, window_bounds = array<i64: 2, 8, 128>}, {transform_indices = @transform_1, window_bounds = array<i64: 2, 128, 128>}, {transform_indices = @transform_2, window_bounds = array<i64: 2, 128, 128>}, {transform_indices = @transform_3, window_bounds = array<i64: 2, 1, 128>}, {pipeline_mode = #tpu.pipeline_mode<synchronous>, transform_indices = @transform_4, window_bounds = array<i64: 64, 128>}, {pipeline_mode = #tpu.pipeline_mode<synchronous>, transform_indices = @transform_5, window_bounds = array<i64: 64, 64>}, {pipeline_mode = #tpu.pipeline_mode<synchronous>, transform_indices = @transform_6, window_bounds = array<i64: 128, 128>}, {pipeline_mode = #tpu.pipeline_mode<synchronous>, transform_indices = @transform_7, window_bounds = array<i64: 128, 768>}, {pipeline_mode = #tpu.pipeline_mode<synchronous>, transform_indices = @transform_8, window_bounds = array<i64: 128, 128>}, {pipeline_mode = #tpu.pipeline_mode<synchronous>, transform_indices = @transform_9, window_bounds = array<i64: 128, 128>}, {pipeline_mode = #tpu.pipeline_mode<synchronous>, transform_indices = @transform_10, window_bounds = array<i64: 8, 128>}, {transform_indices = @transform_11, window_bounds = array<i64: 2, 8, 128>}]} {
    %c0 = arith.constant 0 : index
    %c0_0 = arith.constant 0 : index
    %c0_1 = arith.constant 0 : index
    %0 = vector.load %arg1[%c0, %c0_0, %c0_1] : memref<2x8x128xf32, #tpu.memory_space<vmem>>, vector<2x8x128xf32>
    %1 = vector.shape_cast %0 : vector<2x8x128xf32> to vector<16x128xf32>
    %2 = arith.truncf %1 : vector<16x128xf32> to vector<16x128xbf16>
    %c0_2 = arith.constant 0 : index
    %c384 = arith.constant 384 : index
    %3 = vector.load %arg8[%c0_2, %c384] : memref<128x768xbf16, #tpu.memory_space<vmem>>, vector<128x128xbf16>
    %c0_3 = arith.constant 0 : index
    %c512 = arith.constant 512 : index
    %4 = vector.load %arg8[%c0_3, %c512] : memref<128x768xbf16, #tpu.memory_space<vmem>>, vector<128x128xbf16>
    %c0_4 = arith.constant 0 : index
    %c640 = arith.constant 640 : index
    %5 = vector.load %arg8[%c0_4, %c640] : memref<128x768xbf16, #tpu.memory_space<vmem>>, vector<128x128xbf16>
    %c0_5 = arith.constant 0 : index
    %c0_6 = arith.constant 0 : index
    %6 = vector.load %arg9[%c0_5, %c0_6] : memref<128x128xbf16, #tpu.memory_space<vmem>>, vector<128x128xbf16>
    %c0_7 = arith.constant 0 : index
    %c0_8 = arith.constant 0 : index
    %7 = vector.load %arg10[%c0_7, %c0_8] : memref<128x128xbf16, #tpu.memory_space<vmem>>, vector<128x128xbf16>
    %c0_9 = arith.constant 0 : index
    %c0_10 = arith.constant 0 : index
    %8 = vector.load %arg11[%c0_9, %c0_10] : memref<8x128xf32, #tpu.memory_space<vmem>>, vector<1x128xf32>
    %c1 = arith.constant 1 : index
    %c0_11 = arith.constant 0 : index
    %9 = vector.load %arg11[%c1, %c0_11] : memref<8x128xf32, #tpu.memory_space<vmem>>, vector<1x128xf32>
    %c2 = arith.constant 2 : index
    %c0_12 = arith.constant 0 : index
    %10 = vector.load %arg11[%c2, %c0_12] : memref<8x128xf32, #tpu.memory_space<vmem>>, vector<1x128xf32>
    %c3 = arith.constant 3 : index
    %c0_13 = arith.constant 0 : index
    %11 = vector.load %arg11[%c3, %c0_13] : memref<8x128xf32, #tpu.memory_space<vmem>>, vector<1x128xf32>
    %c4 = arith.constant 4 : index
    %c0_14 = arith.constant 0 : index
    %12 = vector.load %arg11[%c4, %c0_14] : memref<8x128xf32, #tpu.memory_space<vmem>>, vector<1x128xf32>
    %c5 = arith.constant 5 : index
    %c0_15 = arith.constant 0 : index
    %13 = vector.load %arg11[%c5, %c0_15] : memref<8x128xf32, #tpu.memory_space<vmem>>, vector<1x128xf32>
    %c6 = arith.constant 6 : index
    %c0_16 = arith.constant 0 : index
    %14 = vector.load %arg11[%c6, %c0_16] : memref<8x128xf32, #tpu.memory_space<vmem>>, vector<1x128xf32>
    %c7 = arith.constant 7 : index
    %c0_17 = arith.constant 0 : index
    %15 = vector.load %arg11[%c7, %c0_17] : memref<8x128xf32, #tpu.memory_space<vmem>>, vector<1x128xf32>
    %c0_18 = arith.constant 0 : index
    %c0_19 = arith.constant 0 : index
    %16 = vector.load %arg5[%c0_18, %c0_19] : memref<64x128xf32, #tpu.memory_space<vmem>>, vector<64x128xf32>
    %c0_20 = arith.constant 0 : index
    %c0_21 = arith.constant 0 : index
    %17 = vector.load %arg8[%c0_20, %c0_21] : memref<128x768xbf16, #tpu.memory_space<vmem>>, vector<128x384xbf16>
    %cst = arith.constant dense<0.000000e+00> : vector<16x384xf32>
    %18 = tpu.matmul %2, %17, %cst {dimension_numbers = #tpu.dot_dimension_numbers<[1], [0], [0], [1], [0, 0, 1, 1], [], []>} : vector<16x128xbf16>, vector<128x384xbf16>, vector<16x384xf32> -> vector<16x384xf32>
    %19 = vector.extract_strided_slice %18 {offsets = [0, 0], sizes = [16, 128], strides = [1, 1]} : vector<16x384xf32> to vector<16x128xf32>
    %20 = vector.extract_strided_slice %18 {offsets = [0, 128], sizes = [16, 128], strides = [1, 1]} : vector<16x384xf32> to vector<16x128xf32>
    %21 = vector.extract_strided_slice %18 {offsets = [0, 256], sizes = [16, 128], strides = [1, 1]} : vector<16x384xf32> to vector<16x128xf32>
    %22 = vector.shape_cast %19 : vector<16x128xf32> to vector<2x8x128xf32>
    %23 = arith.truncf %22 : vector<2x8x128xf32> to vector<2x8x128xbf16>
    %24 = vector.shape_cast %20 : vector<16x128xf32> to vector<2x8x128xf32>
    %25 = vector.shape_cast %24 : vector<2x8x128xf32> to vector<2x1x8x128xf32>
    %26 = vector.shape_cast %25 : vector<2x1x8x128xf32> to vector<2x1x8x128xf32>
    %27 = vector.broadcast %26 : vector<2x1x8x128xf32> to vector<2x8x8x128xf32>
    %28 = vector.shape_cast %27 : vector<2x8x8x128xf32> to vector<2x64x128xf32>
    %29 = vector.shape_cast %16 : vector<64x128xf32> to vector<1x64x128xf32>
    %30 = vector.broadcast %29 : vector<1x64x128xf32> to vector<2x64x128xf32>
    %31 = arith.mulf %28, %30 : vector<2x64x128xf32>
    %32 = arith.truncf %31 : vector<2x64x128xf32> to vector<2x64x128xbf16>
    %33 = vector.shape_cast %21 : vector<16x128xf32> to vector<2x8x128xf32>
    %34 = vector.shape_cast %33 : vector<2x8x128xf32> to vector<2x1x8x128xf32>
    %35 = vector.shape_cast %34 : vector<2x1x8x128xf32> to vector<2x1x8x128xf32>
    %36 = vector.broadcast %35 : vector<2x1x8x128xf32> to vector<2x8x8x128xf32>
    %37 = vector.shape_cast %36 : vector<2x8x8x128xf32> to vector<2x64x128xf32>
    %38 = vector.shape_cast %16 : vector<64x128xf32> to vector<1x64x128xf32>
    %39 = vector.broadcast %38 : vector<1x64x128xf32> to vector<2x64x128xf32>
    %40 = arith.mulf %37, %39 : vector<2x64x128xf32>
    %41 = arith.truncf %40 : vector<2x64x128xf32> to vector<2x64x128xbf16>
    "tpu.trace_start"() <{level = 10 : i32, message = "bqd,bjd->bqj"}> : () -> ()
    %cst_22 = arith.constant dense<0.000000e+00> : vector<2x8x64xf32>
    %42 = tpu.matmul %23, %32, %cst_22 {dimension_numbers = #tpu.dot_dimension_numbers<[2], [2], [1], [1], [0, 0, 0, 1, 1, 1], [0], [0]>} : vector<2x8x128xbf16>, vector<2x64x128xbf16>, vector<2x8x64xf32> -> vector<2x8x64xf32>
    "tpu.trace_stop"() : () -> ()
    %cst_23 = arith.constant 0.577350259 : f32
    %43 = vector.broadcast %cst_23 : f32 to vector<2x8x64xf32>
    %44 = arith.mulf %42, %43 : vector<2x8x64xf32>
    %45 = vector.shape_cast %44 : vector<2x8x64xf32> to vector<16x64xf32>
    %c0_24 = arith.constant 0 : index
    %c0_25 = arith.constant 0 : index
    %46 = vector.load %arg6[%c0_24, %c0_25] : memref<64x64xf32, #tpu.memory_space<vmem>>, vector<64x64xf32>
    %cst_26 = arith.constant dense<0xFF800000> : vector<16xf32>
    %47 = vector.multi_reduction <maximumf>, %45, %cst_26 [1] : vector<16x64xf32> to vector<16xf32>
    %48 = vector.shape_cast %47 : vector<16xf32> to vector<16x1xf32>
    %49 = vector.broadcast %48 : vector<16x1xf32> to vector<16x64xf32>
    %50 = arith.subf %45, %49 : vector<16x64xf32>
    %51 = math.exp %50 : vector<16x64xf32>
    %cst_27 = arith.constant dense<0.000000e+00> : vector<16x64xf32>
    %52 = tpu.matmul %51, %46, %cst_27 {dimension_numbers = #tpu.dot_dimension_numbers<[1], [0], [0], [1], [0, 0, 1, 1], [], []>} : vector<16x64xf32>, vector<64x64xf32>, vector<16x64xf32> -> vector<16x64xf32>
    %cst_28 = arith.constant 1.000000e-30 : f32
    %53 = vector.broadcast %cst_28 : f32 to vector<16x64xf32>
    %54 = arith.maximumf %52, %53 : vector<16x64xf32>
    %55 = tpu.reciprocal %54 {approx = true} : vector<16x64xf32> -> vector<16x64xf32>
    %56 = arith.mulf %51, %55 : vector<16x64xf32>
    %57 = vector.shape_cast %56 : vector<16x64xf32> to vector<2x8x64xf32>
    %58 = arith.truncf %57 : vector<2x8x64xf32> to vector<2x8x64xbf16>
    "tpu.trace_start"() <{level = 10 : i32, message = "bqj,bjd->bqd"}> : () -> ()
    %cst_29 = arith.constant dense<0.000000e+00> : vector<2x8x128xf32>
    %59 = tpu.matmul %58, %41, %cst_29 {dimension_numbers = #tpu.dot_dimension_numbers<[2], [1], [1], [2], [0, 0, 0, 1, 1, 2], [0], [0]>} : vector<2x8x64xbf16>, vector<2x64x128xbf16>, vector<2x8x128xf32> -> vector<2x8x128xf32>
    "tpu.trace_stop"() : () -> ()
    %60 = vector.shape_cast %59 : vector<2x8x128xf32> to vector<16x128xf32>
    %61 = arith.truncf %60 : vector<16x128xf32> to vector<16x128xbf16>
    %cst_30 = arith.constant dense<0.000000e+00> : vector<16x128xf32>
    %62 = tpu.matmul %61, %3, %cst_30 {dimension_numbers = #tpu.dot_dimension_numbers<[1], [0], [0], [1], [0, 0, 1, 1], [], []>} : vector<16x128xbf16>, vector<128x128xbf16>, vector<16x128xf32> -> vector<16x128xf32>
    %63 = arith.addf %62, %1 : vector<16x128xf32>
    %cst_31 = arith.constant dense<0.000000e+00> : vector<16xf32>
    %64 = vector.multi_reduction <add>, %63, %cst_31 [1] : vector<16x128xf32> to vector<16xf32>
    %65 = vector.shape_cast %64 : vector<16xf32> to vector<16x1xf32>
    %cst_32 = arith.constant 0.0416666679 : f32
    %66 = vector.broadcast %cst_32 : f32 to vector<16x1xf32>
    %67 = arith.mulf %65, %66 : vector<16x1xf32>
    %68 = arith.mulf %63, %63 : vector<16x128xf32>
    %cst_33 = arith.constant dense<0.000000e+00> : vector<16xf32>
    %69 = vector.multi_reduction <add>, %68, %cst_33 [1] : vector<16x128xf32> to vector<16xf32>
    %70 = vector.shape_cast %69 : vector<16xf32> to vector<16x1xf32>
    %cst_34 = arith.constant 0.0416666679 : f32
    %71 = vector.broadcast %cst_34 : f32 to vector<16x1xf32>
    %72 = arith.mulf %70, %71 : vector<16x1xf32>
    %73 = arith.mulf %67, %67 : vector<16x1xf32>
    %74 = arith.subf %72, %73 : vector<16x1xf32>
    %75 = vector.broadcast %67 : vector<16x1xf32> to vector<16x128xf32>
    %76 = arith.subf %63, %75 : vector<16x128xf32>
    %cst_35 = arith.constant 9.99999974E-6 : f32
    %77 = vector.broadcast %cst_35 : f32 to vector<16x1xf32>
    %78 = arith.addf %74, %77 : vector<16x1xf32>
    %79 = math.rsqrt %78 : vector<16x1xf32>
    %80 = vector.broadcast %79 : vector<16x1xf32> to vector<16x128xf32>
    %81 = arith.mulf %76, %80 : vector<16x128xf32>
    %82 = vector.broadcast %10 : vector<1x128xf32> to vector<16x128xf32>
    %83 = arith.mulf %81, %82 : vector<16x128xf32>
    %84 = vector.broadcast %11 : vector<1x128xf32> to vector<16x128xf32>
    %85 = arith.addf %83, %84 : vector<16x128xf32>
    %86 = arith.truncf %85 : vector<16x128xf32> to vector<16x128xbf16>
    %cst_36 = arith.constant dense<0.000000e+00> : vector<16x128xf32>
    %87 = tpu.matmul %86, %4, %cst_36 {dimension_numbers = #tpu.dot_dimension_numbers<[1], [0], [0], [1], [0, 0, 1, 1], [], []>} : vector<16x128xbf16>, vector<128x128xbf16>, vector<16x128xf32> -> vector<16x128xf32>
    %88 = vector.shape_cast %87 : vector<16x128xf32> to vector<2x8x128xf32>
    %89 = arith.truncf %88 : vector<2x8x128xf32> to vector<2x8x128xbf16>
    %c0_37 = arith.constant 0 : index
    %c0_38 = arith.constant 0 : index
    %c0_39 = arith.constant 0 : index
    %90 = vector.load %arg2[%c0_37, %c0_38, %c0_39] : memref<2x128x128xbf16, #tpu.memory_space<vmem>>, vector<2x128x128xbf16>
    "tpu.trace_start"() <{level = 10 : i32, message = "bqd,bdj->bqj"}> : () -> ()
    %cst_40 = arith.constant dense<0.000000e+00> : vector<2x8x128xf32>
    %91 = tpu.matmul %89, %90, %cst_40 {dimension_numbers = #tpu.dot_dimension_numbers<[2], [1], [1], [2], [0, 0, 0, 1, 1, 2], [0], [0]>} : vector<2x8x128xbf16>, vector<2x128x128xbf16>, vector<2x8x128xf32> -> vector<2x8x128xf32>
    "tpu.trace_stop"() : () -> ()
    %cst_41 = arith.constant 0.577350259 : f32
    %92 = vector.broadcast %cst_41 : f32 to vector<2x8x128xf32>
    %93 = arith.mulf %91, %92 : vector<2x8x128xf32>
    %c0_42 = arith.constant 0 : index
    %c0_43 = arith.constant 0 : index
    %c0_44 = arith.constant 0 : index
    %94 = vector.load %arg4[%c0_42, %c0_43, %c0_44] : memref<2x1x128xf32, #tpu.memory_space<vmem>>, vector<2x1x128xf32>
    %95 = vector.broadcast %94 : vector<2x1x128xf32> to vector<2x8x128xf32>
    %96 = arith.addf %93, %95 : vector<2x8x128xf32>
    %97 = vector.shape_cast %96 : vector<2x8x128xf32> to vector<16x128xf32>
    %c0_45 = arith.constant 0 : index
    %c0_46 = arith.constant 0 : index
    %98 = vector.load %arg7[%c0_45, %c0_46] : memref<128x128xf32, #tpu.memory_space<vmem>>, vector<128x128xf32>
    %cst_47 = arith.constant dense<0xFF800000> : vector<16xf32>
    %99 = vector.multi_reduction <maximumf>, %97, %cst_47 [1] : vector<16x128xf32> to vector<16xf32>
    %100 = vector.shape_cast %99 : vector<16xf32> to vector<16x1xf32>
    %101 = vector.broadcast %100 : vector<16x1xf32> to vector<16x128xf32>
    %102 = arith.subf %97, %101 : vector<16x128xf32>
    %103 = math.exp %102 : vector<16x128xf32>
    %cst_48 = arith.constant dense<0.000000e+00> : vector<16x128xf32>
    %104 = tpu.matmul %103, %98, %cst_48 {dimension_numbers = #tpu.dot_dimension_numbers<[1], [0], [0], [1], [0, 0, 1, 1], [], []>} : vector<16x128xf32>, vector<128x128xf32>, vector<16x128xf32> -> vector<16x128xf32>
    %cst_49 = arith.constant 1.000000e-30 : f32
    %105 = vector.broadcast %cst_49 : f32 to vector<16x128xf32>
    %106 = arith.maximumf %104, %105 : vector<16x128xf32>
    %107 = tpu.reciprocal %106 {approx = true} : vector<16x128xf32> -> vector<16x128xf32>
    %108 = arith.mulf %103, %107 : vector<16x128xf32>
    %109 = vector.shape_cast %108 : vector<16x128xf32> to vector<2x8x128xf32>
    %110 = arith.truncf %109 : vector<2x8x128xf32> to vector<2x8x128xbf16>
    %c0_50 = arith.constant 0 : index
    %c0_51 = arith.constant 0 : index
    %c0_52 = arith.constant 0 : index
    %111 = vector.load %arg3[%c0_50, %c0_51, %c0_52] : memref<2x128x128xbf16, #tpu.memory_space<vmem>>, vector<2x128x128xbf16>
    "tpu.trace_start"() <{level = 10 : i32, message = "bqj,bjd->bqd"}> : () -> ()
    %cst_53 = arith.constant dense<0.000000e+00> : vector<2x8x128xf32>
    %112 = tpu.matmul %110, %111, %cst_53 {dimension_numbers = #tpu.dot_dimension_numbers<[2], [1], [1], [2], [0, 0, 0, 1, 1, 2], [0], [0]>} : vector<2x8x128xbf16>, vector<2x128x128xbf16>, vector<2x8x128xf32> -> vector<2x8x128xf32>
    "tpu.trace_stop"() : () -> ()
    %113 = vector.shape_cast %112 : vector<2x8x128xf32> to vector<16x128xf32>
    %114 = arith.truncf %113 : vector<16x128xf32> to vector<16x128xbf16>
    %cst_54 = arith.constant dense<0.000000e+00> : vector<16x128xf32>
    %115 = tpu.matmul %114, %5, %cst_54 {dimension_numbers = #tpu.dot_dimension_numbers<[1], [0], [0], [1], [0, 0, 1, 1], [], []>} : vector<16x128xbf16>, vector<128x128xbf16>, vector<16x128xf32> -> vector<16x128xf32>
    %116 = arith.addf %115, %85 : vector<16x128xf32>
    %cst_55 = arith.constant dense<0.000000e+00> : vector<16xf32>
    %117 = vector.multi_reduction <add>, %116, %cst_55 [1] : vector<16x128xf32> to vector<16xf32>
    %118 = vector.shape_cast %117 : vector<16xf32> to vector<16x1xf32>
    %cst_56 = arith.constant 0.0416666679 : f32
    %119 = vector.broadcast %cst_56 : f32 to vector<16x1xf32>
    %120 = arith.mulf %118, %119 : vector<16x1xf32>
    %121 = arith.mulf %116, %116 : vector<16x128xf32>
    %cst_57 = arith.constant dense<0.000000e+00> : vector<16xf32>
    %122 = vector.multi_reduction <add>, %121, %cst_57 [1] : vector<16x128xf32> to vector<16xf32>
    %123 = vector.shape_cast %122 : vector<16xf32> to vector<16x1xf32>
    %cst_58 = arith.constant 0.0416666679 : f32
    %124 = vector.broadcast %cst_58 : f32 to vector<16x1xf32>
    %125 = arith.mulf %123, %124 : vector<16x1xf32>
    %126 = arith.mulf %120, %120 : vector<16x1xf32>
    %127 = arith.subf %125, %126 : vector<16x1xf32>
    %128 = vector.broadcast %120 : vector<16x1xf32> to vector<16x128xf32>
    %129 = arith.subf %116, %128 : vector<16x128xf32>
    %cst_59 = arith.constant 9.99999974E-6 : f32
    %130 = vector.broadcast %cst_59 : f32 to vector<16x1xf32>
    %131 = arith.addf %127, %130 : vector<16x1xf32>
    %132 = math.rsqrt %131 : vector<16x1xf32>
    %133 = vector.broadcast %132 : vector<16x1xf32> to vector<16x128xf32>
    %134 = arith.mulf %129, %133 : vector<16x128xf32>
    %135 = vector.broadcast %12 : vector<1x128xf32> to vector<16x128xf32>
    %136 = arith.mulf %134, %135 : vector<16x128xf32>
    %137 = vector.broadcast %13 : vector<1x128xf32> to vector<16x128xf32>
    %138 = arith.addf %136, %137 : vector<16x128xf32>
    %139 = arith.truncf %138 : vector<16x128xf32> to vector<16x128xbf16>
    %cst_60 = arith.constant dense<0.000000e+00> : vector<16x128xf32>
    %140 = tpu.matmul %139, %6, %cst_60 {dimension_numbers = #tpu.dot_dimension_numbers<[1], [0], [0], [1], [0, 0, 1, 1], [], []>} : vector<16x128xbf16>, vector<128x128xbf16>, vector<16x128xf32> -> vector<16x128xf32>
    %141 = vector.broadcast %8 : vector<1x128xf32> to vector<16x128xf32>
    %142 = arith.addf %140, %141 : vector<16x128xf32>
    %cst_61 = arith.constant 0.000000e+00 : f32
    %143 = vector.broadcast %cst_61 : f32 to vector<16x128xf32>
    %144 = arith.maximumf %142, %143 : vector<16x128xf32>
    %145 = arith.truncf %144 : vector<16x128xf32> to vector<16x128xbf16>
    %cst_62 = arith.constant dense<0.000000e+00> : vector<16x128xf32>
    %146 = tpu.matmul %145, %7, %cst_62 {dimension_numbers = #tpu.dot_dimension_numbers<[1], [0], [0], [1], [0, 0, 1, 1], [], []>} : vector<16x128xbf16>, vector<128x128xbf16>, vector<16x128xf32> -> vector<16x128xf32>
    %147 = vector.broadcast %9 : vector<1x128xf32> to vector<16x128xf32>
    %148 = arith.addf %146, %147 : vector<16x128xf32>
    %149 = arith.addf %148, %138 : vector<16x128xf32>
    %cst_63 = arith.constant dense<0.000000e+00> : vector<16xf32>
    %150 = vector.multi_reduction <add>, %149, %cst_63 [1] : vector<16x128xf32> to vector<16xf32>
    %151 = vector.shape_cast %150 : vector<16xf32> to vector<16x1xf32>
    %cst_64 = arith.constant 0.0416666679 : f32
    %152 = vector.broadcast %cst_64 : f32 to vector<16x1xf32>
    %153 = arith.mulf %151, %152 : vector<16x1xf32>
    %154 = arith.mulf %149, %149 : vector<16x128xf32>
    %cst_65 = arith.constant dense<0.000000e+00> : vector<16xf32>
    %155 = vector.multi_reduction <add>, %154, %cst_65 [1] : vector<16x128xf32> to vector<16xf32>
    %156 = vector.shape_cast %155 : vector<16xf32> to vector<16x1xf32>
    %cst_66 = arith.constant 0.0416666679 : f32
    %157 = vector.broadcast %cst_66 : f32 to vector<16x1xf32>
    %158 = arith.mulf %156, %157 : vector<16x1xf32>
    %159 = arith.mulf %153, %153 : vector<16x1xf32>
    %160 = arith.subf %158, %159 : vector<16x1xf32>
    %161 = vector.broadcast %153 : vector<16x1xf32> to vector<16x128xf32>
    %162 = arith.subf %149, %161 : vector<16x128xf32>
    %cst_67 = arith.constant 9.99999974E-6 : f32
    %163 = vector.broadcast %cst_67 : f32 to vector<16x1xf32>
    %164 = arith.addf %160, %163 : vector<16x1xf32>
    %165 = math.rsqrt %164 : vector<16x1xf32>
    %166 = vector.broadcast %165 : vector<16x1xf32> to vector<16x128xf32>
    %167 = arith.mulf %162, %166 : vector<16x128xf32>
    %168 = vector.broadcast %14 : vector<1x128xf32> to vector<16x128xf32>
    %169 = arith.mulf %167, %168 : vector<16x128xf32>
    %170 = vector.broadcast %15 : vector<1x128xf32> to vector<16x128xf32>
    %171 = arith.addf %169, %170 : vector<16x128xf32>
    %172 = vector.shape_cast %171 : vector<16x128xf32> to vector<2x8x128xf32>
    %173 = arith.truncf %172 : vector<2x8x128xf32> to vector<2x8x128xbf16>
    %c0_68 = arith.constant 0 : index
    %c0_69 = arith.constant 0 : index
    %c0_70 = arith.constant 0 : index
    %174 = vector.load %arg12[%c0_68, %c0_69, %c0_70] : memref<2x8x128xbf16, #tpu.memory_space<vmem>>, vector<2x8x128xbf16>
    tpu.vector_store %arg12[%c0_68, %c0_69, %c0_70], %173 {strides = array<i32>} : memref<2x8x128xbf16, #tpu.memory_space<vmem>>, vector<2x8x128xbf16>,
    return
  }
  func.func @transform_0(%arg0: i32) -> (i32, i32, i32) {
    %c0_i32 = arith.constant 0 : i32
    %c0_i32_0 = arith.constant 0 : i32
    %c0_i32_1 = arith.constant 0 : i32
    return %arg0, %c0_i32, %c0_i32_0 : i32, i32, i32
  }
  func.func @transform_1(%arg0: i32) -> (i32, i32, i32) {
    %c0_i32 = arith.constant 0 : i32
    %c0_i32_0 = arith.constant 0 : i32
    %c0_i32_1 = arith.constant 0 : i32
    return %arg0, %c0_i32, %c0_i32_0 : i32, i32, i32
  }
  func.func @transform_2(%arg0: i32) -> (i32, i32, i32) {
    %c0_i32 = arith.constant 0 : i32
    %c0_i32_0 = arith.constant 0 : i32
    %c0_i32_1 = arith.constant 0 : i32
    return %arg0, %c0_i32, %c0_i32_0 : i32, i32, i32
  }
  func.func @transform_3(%arg0: i32) -> (i32, i32, i32) {
    %c0_i32 = arith.constant 0 : i32
    %c0_i32_0 = arith.constant 0 : i32
    %c0_i32_1 = arith.constant 0 : i32
    return %arg0, %c0_i32, %c0_i32_0 : i32, i32, i32
  }
  func.func @transform_4(%arg0: i32) -> (i32, i32) {
    %c0_i32 = arith.constant 0 : i32
    %c0_i32_0 = arith.constant 0 : i32
    %c0_i32_1 = arith.constant 0 : i32
    return %c0_i32, %c0_i32_0 : i32, i32
  }
  func.func @transform_5(%arg0: i32) -> (i32, i32) {
    %c0_i32 = arith.constant 0 : i32
    %c0_i32_0 = arith.constant 0 : i32
    %c0_i32_1 = arith.constant 0 : i32
    return %c0_i32, %c0_i32_0 : i32, i32
  }
  func.func @transform_6(%arg0: i32) -> (i32, i32) {
    %c0_i32 = arith.constant 0 : i32
    %c0_i32_0 = arith.constant 0 : i32
    %c0_i32_1 = arith.constant 0 : i32
    return %c0_i32, %c0_i32_0 : i32, i32
  }
  func.func @transform_7(%arg0: i32) -> (i32, i32) {
    %c0_i32 = arith.constant 0 : i32
    %c0_i32_0 = arith.constant 0 : i32
    %c0_i32_1 = arith.constant 0 : i32
    return %c0_i32, %c0_i32_0 : i32, i32
  }
  func.func @transform_8(%arg0: i32) -> (i32, i32) {
    %c0_i32 = arith.constant 0 : i32
    %c0_i32_0 = arith.constant 0 : i32
    %c0_i32_1 = arith.constant 0 : i32
    return %c0_i32, %c0_i32_0 : i32, i32
  }
  func.func @transform_9(%arg0: i32) -> (i32, i32) {
    %c0_i32 = arith.constant 0 : i32
    %c0_i32_0 = arith.constant 0 : i32
    %c0_i32_1 = arith.constant 0 : i32
    return %c0_i32, %c0_i32_0 : i32, i32
  }
  func.func @transform_10(%arg0: i32) -> (i32, i32) {
    %c0_i32 = arith.constant 0 : i32
    %c0_i32_0 = arith.constant 0 : i32
    %c0_i32_1 = arith.constant 0 : i32
    return %c0_i32, %c0_i32_0 : i32, i32
  }
  func.func @transform_11(%arg0: i32) -> (i32, i32, i32) {
    %c0_i32 = arith.constant 0 : i32
    %c0_i32_0 = arith.constant 0 : i32
    %c0_i32_1 = arith.constant 0 : i32
    return %arg0, %c0_i32, %c0_i32_0 : i32, i32, i32
  }
}

</mosaic_0001>

<llo_original>
// kernel: tpu_custom_call.1
$region0: #{tpu_custom_call.1}
  #allocation0 [shape = 'u32[]', space=smem, size = 0x4, offset = 0x4, fixed_abs, tag = 'smem constant byte address 0x4 - core index']
  #allocation1 [shape = 'u32[144,128]{1,0:T(1,128)}', space=vmem, size = 0x12000, scoped, tag = 'internal scratch']
  %s0 = inlined_call_operand.hbm [shape: f32[2,8,128], index: 0, kind: input, shape index: {}]
  %s1 = inlined_call_operand.hbm [shape: bf16[2,128,128], index: 1, kind: input, shape index: {}]
  %s2 = inlined_call_operand.hbm [shape: bf16[2,128,128], index: 2, kind: input, shape index: {}]
  %s3 = inlined_call_operand.vmem [shape: f32[2,1,128], index: 3, kind: input, shape index: {}]
  %s4 = inlined_call_operand.hbm [shape: f32[64,128], index: 4, kind: input, shape index: {}]
  %s5 = inlined_call_operand.hbm [shape: f32[64,64], index: 5, kind: input, shape index: {}]
  %s6 = inlined_call_operand.hbm [shape: f32[128,128], index: 6, kind: input, shape index: {}]
  %s7 = inlined_call_operand.hbm [shape: bf16[128,768], index: 7, kind: input, shape index: {}]
  %s8 = inlined_call_operand.hbm [shape: bf16[128,128], index: 8, kind: input, shape index: {}]
  %s9 = inlined_call_operand.hbm [shape: bf16[128,128], index: 9, kind: input, shape index: {}]
  %s10 = inlined_call_operand.vmem [shape: f32[8,128], index: 10, kind: input, shape index: {}]
  %s11 = inlined_call_operand.hbm [shape: bf16[2,8,128], index: 11, kind: output, shape index: {}]
  %s12 = sld [smem:[#allocation0]]
  $region90: #{tpu_custom_call.1} parent=0
    _
  %s14 = ssub.s32 1, %s12
  %s15 = scalar_select 0, %s14, %s12
  $region1: #{tpu_custom_call.1} parent=0
    #allocation2 [shape = 'u8[8192]{0}', space=vmem, size = 0x2000, scoped, tag = 'input window, operand 0, single buffered']
    #allocation3 [shape = 's32[1]{0}', space=sflag, size = 0x4, scoped, tag = 'scoped memory for tpu_custom_call.1']
    #allocation4 [shape = 's32[1]{0}', space=sflag, size = 0x4, scoped, tag = 'scoped memory for tpu_custom_call.1']
    #allocation5 [shape = 'u8[65536]{0}', space=vmem, size = 0x10000, scoped, tag = 'input window, operand 1, single buffered']
    #allocation6 [shape = 's32[1]{0}', space=sflag, size = 0x4, scoped, tag = 'scoped memory for tpu_custom_call.1']
    #allocation7 [shape = 'u8[65536]{0}', space=vmem, size = 0x10000, scoped, tag = 'input window, operand 2, single buffered']
    #allocation8 [shape = 'u8[32768]{0}', space=vmem, size = 0x8000, scoped, tag = 'input window, operand 4, single buffered']
    #allocation9 [shape = 's32[1]{0}', space=sflag, size = 0x4, scoped, tag = 'scoped memory for tpu_custom_call.1']
    #allocation10 [shape = 'u8[32768]{0}', space=vmem, size = 0x8000, scoped, tag = 'input window, operand 5, single buffered']
    #allocation11 [shape = 'u8[65536]{0}', space=vmem, size = 0x10000, scoped, tag = 'input window, operand 6, single buffered']
    #allocation12 [shape = 's32[1]{0}', space=sflag, size = 0x4, scoped, tag = 'scoped memory for tpu_custom_call.1']
    #allocation13 [shape = 'u8[196608]{0}', space=vmem, size = 0x30000, scoped, tag = 'input window, operand 7, single buffered']
    #allocation14 [shape = 'u8[32768]{0}', space=vmem, size = 0x8000, scoped, tag = 'input window, operand 8, single buffered']
    #allocation15 [shape = 's32[1]{0}', space=sflag, size = 0x4, scoped, tag = 'scoped memory for tpu_custom_call.1']
    #allocation16 [shape = 'u8[32768]{0}', space=vmem, size = 0x8000, scoped, tag = 'input window, operand 9, single buffered']
    #allocation17 [shape = 'u8[4096]{0}', space=vmem, size = 0x1000, scoped, tag = 'output window, operand 0, single buffered']
    %16 = vsyncpa [#allocation3], 0
    %17 = vsyncpa [#allocation6], 0
    %18 = vsyncpa [#allocation9], 0
    %19 = vsyncpa [#allocation12], 0
    %20 = vsyncpa [#allocation15], 0
    %21 = vsyncpa [#allocation4], 0
    // Predicated region
    $region2: #{tpu_custom_call.1} parent=1 // pred_check
      _
    $region3: #{tpu_custom_call.1} parent=1 // pred_check_branch
      %23 = sbr.rel (0) target = $region5
    $region4: #{tpu_custom_call.1} parent=1 // pred_region
      %s25 = ssub.s32 256, 256
      %26 = vsyncadd [#allocation3], %s25
      %s27 = sshll.u32 [#allocation2], 4
      %s28 = int_to_ptr.vmem [resolvable:$true] %s27
      %33 = dma.hbm_to_vmem [thread:$0]  %s0, 256, %s28, [#allocation3], 128, 128, 8
    $region5: #{tpu_custom_call.1} parent=1 // pred_fallthru
      _
    // Predicated region
    $region6: #{tpu_custom_call.1} parent=1 // pred_check
      _
    $region7: #{tpu_custom_call.1} parent=1 // pred_check_branch
      %35 = sbr.rel (0) target = $region9
    $region8: #{tpu_custom_call.1} parent=1 // pred_region
      %s37 = ssub.s32 2048, 2048
      %38 = vsyncadd [#allocation6], %s37
      %s39 = sshll.u32 [#allocation5], 4
      %s40 = int_to_ptr.vmem [resolvable:$true] %s39
      %45 = dma.hbm_to_vmem [thread:$0]  %s1, 2048, %s40, [#allocation6], 64, 64, 4
    $region9: #{tpu_custom_call.1} parent=1 // pred_fallthru
      _
    // Predicated region
    $region10: #{tpu_custom_call.1} parent=1 // pred_check
      _
    $region11: #{tpu_custom_call.1} parent=1 // pred_check_branch
      %47 = sbr.rel (0) target = $region13
    $region12: #{tpu_custom_call.1} parent=1 // pred_region
      %s49 = ssub.s32 2048, 2048
      %50 = vsyncadd [#allocation6], %s49
      %s51 = sshll.u32 [#allocation7], 4
      %s52 = int_to_ptr.vmem [resolvable:$true] %s51
      %57 = dma.hbm_to_vmem [thread:$0]  %s2, 2048, %s52, [#allocation6], 64, 64, 4
    $region13: #{tpu_custom_call.1} parent=1 // pred_fallthru
      _
    // Predicated region
    $region14: #{tpu_custom_call.1} parent=1 // pred_check
      _
    $region15: #{tpu_custom_call.1} parent=1 // pred_check_branch
      %59 = sbr.rel (0) target = $region17
    $region16: #{tpu_custom_call.1} parent=1 // pred_region
      _
    $region17: #{tpu_custom_call.1} parent=1 // pred_fallthru
      _
    // Predicated region
    $region18: #{tpu_custom_call.1} parent=1 // pred_check
      _
    $region19: #{tpu_custom_call.1} parent=1 // pred_check_branch
      %61 = sbr.rel (0) target = $region21
    $region20: #{tpu_custom_call.1} parent=1 // pred_region
      %s63 = ssub.s32 1024, 1024
      %64 = vsyncadd [#allocation9], %s63
      %s65 = sshll.u32 [#allocation8], 4
      %s66 = int_to_ptr.vmem [resolvable:$true] %s65
      %71 = dma.hbm_to_vmem [thread:$0]  %s4, 1024, %s66, [#allocation9], 128, 128, 8
    $region21: #{tpu_custom_call.1} parent=1 // pred_fallthru
      _
    // Predicated region
    $region22: #{tpu_custom_call.1} parent=1 // pred_check
      _
    $region23: #{tpu_custom_call.1} parent=1 // pred_check_branch
      %73 = sbr.rel (0) target = $region25
    $region24: #{tpu_custom_call.1} parent=1 // pred_region
      %s75 = ssub.s32 1024, 1024
      %76 = vsyncadd [#allocation9], %s75
      %s77 = sshll.u32 [#allocation10], 4
      %s78 = int_to_ptr.vmem [resolvable:$true] %s77
      %83 = dma.hbm_to_vmem [thread:$0]  %s5, 1024, %s78, [#allocation9], 128, 128, 8
    $region25: #{tpu_custom_call.1} parent=1 // pred_fallthru
      _
    // Predicated region
    $region26: #{tpu_custom_call.1} parent=1 // pred_check
      _
    $region27: #{tpu_custom_call.1} parent=1 // pred_check_branch
      %85 = sbr.rel (0) target = $region29
    $region28: #{tpu_custom_call.1} parent=1 // pred_region
      %s87 = ssub.s32 2048, 2048
      %88 = vsyncadd [#allocation12], %s87
      %s89 = sshll.u32 [#allocation11], 4
      %s90 = int_to_ptr.vmem [resolvable:$true] %s89
      %95 = dma.hbm_to_vmem [thread:$0]  %s6, 2048, %s90, [#allocation12], 128, 128, 8
    $region29: #{tpu_custom_call.1} parent=1 // pred_fallthru
      _
    // Predicated region
    $region30: #{tpu_custom_call.1} parent=1 // pred_check
      _
    $region31: #{tpu_custom_call.1} parent=1 // pred_check_branch
      %97 = sbr.rel (0) target = $region33
    $region32: #{tpu_custom_call.1} parent=1 // pred_region
      %s99 = ssub.s32 6144, 6144
      %100 = vsyncadd [#allocation12], %s99
      %s101 = sshll.u32 [#allocation13], 4
      %s102 = int_to_ptr.vmem [resolvable:$true] %s101
      %107 = dma.hbm_to_vmem [thread:$0]  %s7, 6144, %s102, [#allocation12], 384, 384, 24
    $region33: #{tpu_custom_call.1} parent=1 // pred_fallthru
      _
    // Predicated region
    $region34: #{tpu_custom_call.1} parent=1 // pred_check
      _
    $region35: #{tpu_custom_call.1} parent=1 // pred_check_branch
      %109 = sbr.rel (0) target = $region37
    $region36: #{tpu_custom_call.1} parent=1 // pred_region
      %s111 = ssub.s32 1024, 1024
      %112 = vsyncadd [#allocation15], %s111
      %s113 = sshll.u32 [#allocation14], 4
      %s114 = int_to_ptr.vmem [resolvable:$true] %s113
      %119 = dma.hbm_to_vmem [thread:$0]  %s8, 1024, %s114, [#allocation15], 64, 64, 4
    $region37: #{tpu_custom_call.1} parent=1 // pred_fallthru
      _
    // Predicated region
    $region38: #{tpu_custom_call.1} parent=1 // pred_check
      _
    $region39: #{tpu_custom_call.1} parent=1 // pred_check_branch
      %121 = sbr.rel (0) target = $region41
    $region40: #{tpu_custom_call.1} parent=1 // pred_region
      %s123 = ssub.s32 1024, 1024
      %124 = vsyncadd [#allocation15], %s123
      %s125 = sshll.u32 [#allocation16], 4
      %s126 = int_to_ptr.vmem [resolvable:$true] %s125
      %131 = dma.hbm_to_vmem [thread:$0]  %s9, 1024, %s126, [#allocation15], 64, 64, 4
    $region41: #{tpu_custom_call.1} parent=1 // pred_fallthru
      _
    // Predicated region
    $region42: #{tpu_custom_call.1} parent=1 // pred_check
      _
    $region43: #{tpu_custom_call.1} parent=1 // pred_check_branch
      %133 = sbr.rel (0) target = $region45
    $region44: #{tpu_custom_call.1} parent=1 // pred_region
      _
    $region45: #{tpu_custom_call.1} parent=1 // pred_fallthru
      _
    // Predicated region
    $region46: #{tpu_custom_call.1} parent=1 // pred_check
      _
    $region47: #{tpu_custom_call.1} parent=1 // pred_check_branch
      %135 = sbr.rel (0) target = $region49
    $region48: #{tpu_custom_call.1} parent=1 // pred_region
      %136 = dma.done [#allocation3], 256
    $region49: #{tpu_custom_call.1} parent=1 // pred_fallthru
      _
    // Predicated region
    $region50: #{tpu_custom_call.1} parent=1 // pred_check
      _
    $region51: #{tpu_custom_call.1} parent=1 // pred_check_branch
      %138 = sbr.rel (0) target = $region53
    $region52: #{tpu_custom_call.1} parent=1 // pred_region
      %139 = dma.done [#allocation6], 2048
    $region53: #{tpu_custom_call.1} parent=1 // pred_fallthru
      _
    // Predicated region
    $region54: #{tpu_custom_call.1} parent=1 // pred_check
      _
    $region55: #{tpu_custom_call.1} parent=1 // pred_check_branch
      %141 = sbr.rel (0) target = $region57
    $region56: #{tpu_custom_call.1} parent=1 // pred_region
      %142 = dma.done [#allocation6], 2048
    $region57: #{tpu_custom_call.1} parent=1 // pred_fallthru
      _
    // Predicated region
    $region58: #{tpu_custom_call.1} parent=1 // pred_check
      _
    $region59: #{tpu_custom_call.1} parent=1 // pred_check_branch
      %144 = sbr.rel (0) target = $region61
    $region60: #{tpu_custom_call.1} parent=1 // pred_region
      %145 = dma.done [#allocation9], 1024
    $region61: #{tpu_custom_call.1} parent=1 // pred_fallthru
      _
    // Predicated region
    $region62: #{tpu_custom_call.1} parent=1 // pred_check
      _
    $region63: #{tpu_custom_call.1} parent=1 // pred_check_branch
      %147 = sbr.rel (0) target = $region65
    $region64: #{tpu_custom_call.1} parent=1 // pred_region
      %148 = dma.done [#allocation9], 1024
    $region65: #{tpu_custom_call.1} parent=1 // pred_fallthru
      _
    // Predicated region
    $region66: #{tpu_custom_call.1} parent=1 // pred_check
      _
    $region67: #{tpu_custom_call.1} parent=1 // pred_check_branch
      %150 = sbr.rel (0) target = $region69
    $region68: #{tpu_custom_call.1} parent=1 // pred_region
      %151 = dma.done [#allocation12], 2048
    $region69: #{tpu_custom_call.1} parent=1 // pred_fallthru
      _
    // Predicated region
    $region70: #{tpu_custom_call.1} parent=1 // pred_check
      _
    $region71: #{tpu_custom_call.1} parent=1 // pred_check_branch
      %153 = sbr.rel (0) target = $region73
    $region72: #{tpu_custom_call.1} parent=1 // pred_region
      %154 = dma.done [#allocation12], 6144
    $region73: #{tpu_custom_call.1} parent=1 // pred_fallthru
      _
    // Predicated region
    $region74: #{tpu_custom_call.1} parent=1 // pred_check
      _
    $region75: #{tpu_custom_call.1} parent=1 // pred_check_branch
      %156 = sbr.rel (0) target = $region77
    $region76: #{tpu_custom_call.1} parent=1 // pred_region
      %157 = dma.done [#allocation15], 1024
    $region77: #{tpu_custom_call.1} parent=1 // pred_fallthru
      _
    // Predicated region
    $region78: #{tpu_custom_call.1} parent=1 // pred_check
      _
    $region79: #{tpu_custom_call.1} parent=1 // pred_check_branch
      %159 = sbr.rel (0) target = $region81
    $region80: #{tpu_custom_call.1} parent=1 // pred_region
      %160 = dma.done [#allocation15], 1024
    $region81: #{tpu_custom_call.1} parent=1 // pred_fallthru
      _
    %v162 = vld [vmem:[#allocation2] sm:$0xff]
    %v163 = vld [vmem:[#allocation2 + $0x8] sm:$0xff]
    %v164 = vpack.c.bf16 %v163, %v162
    %v165 = vld [vmem:[#allocation13 + $0xc] sm:$0xf]
    %v166 = vld [vmem:[#allocation13 + $0x24] sm:$0xf]
    %v167 = vld [vmem:[#allocation13 + $0x3c] sm:$0xf]
    %v168 = vld [vmem:[#allocation13 + $0x54] sm:$0xf]
    %v169 = vld [vmem:[#allocation13 + $0x6c] sm:$0xf]
    %v170 = vld [vmem:[#allocation13 + $0x84] sm:$0xf]
    %v171 = vld [vmem:[#allocation13 + $0x9c] sm:$0xf]
    %v172 = vld [vmem:[#allocation13 + $0xb4] sm:$0xf]
    %v173 = vld [vmem:[#allocation13 + $0xcc] sm:$0xf]
    %v174 = vld [vmem:[#allocation13 + $0xe4] sm:$0xf]
    %v175 = vld [vmem:[#allocation13 + $0xfc] sm:$0xf]
    %v176 = vld [vmem:[#allocation13 + $0x114] sm:$0xf]
    %v177 = vld [vmem:[#allocation13 + $0x12c] sm:$0xf]
    %v178 = vld [vmem:[#allocation13 + $0x144] sm:$0xf]
    %v179 = vld [vmem:[#allocation13 + $0x15c] sm:$0xf]
    %v180 = vld [vmem:[#allocation13 + $0x174] sm:$0xf]
    %v181 = vld [vmem:[#allocation13 + $0x10] sm:$0xf]
    %v182 = vld [vmem:[#allocation13 + $0x28] sm:$0xf]
    %v183 = vld [vmem:[#allocation13 + $0x40] sm:$0xf]
    %v184 = vld [vmem:[#allocation13 + $0x58] sm:$0xf]
    %v185 = vld [vmem:[#allocation13 + $0x70] sm:$0xf]
    %v186 = vld [vmem:[#allocation13 + $0x88] sm:$0xf]
    %v187 = vld [vmem:[#allocation13 + $0xa0] sm:$0xf]
    %v188 = vld [vmem:[#allocation13 + $0xb8] sm:$0xf]
    %v189 = vld [vmem:[#allocation13 + $0xd0] sm:$0xf]
    %v190 = vld [vmem:[#allocation13 + $0xe8] sm:$0xf]
    %v191 = vld [vmem:[#allocation13 + $0x100] sm:$0xf]
    %v192 = vld [vmem:[#allocation13 + $0x118] sm:$0xf]
    %v193 = vld [vmem:[#allocation13 + $0x130] sm:$0xf]
    %v194 = vld [vmem:[#allocation13 + $0x148] sm:$0xf]
    %v195 = vld [vmem:[#allocation13 + $0x160] sm:$0xf]
    %v196 = vld [vmem:[#allocation13 + $0x178] sm:$0xf]
    %v197 = vld [vmem:[#allocation13 + $0x14] sm:$0xf]
    %v198 = vld [vmem:[#allocation13 + $0x2c] sm:$0xf]
    %v199 = vld [vmem:[#allocation13 + $0x44] sm:$0xf]
    %v200 = vld [vmem:[#allocation13 + $0x5c] sm:$0xf]
    %v201 = vld [vmem:[#allocation13 + $0x74] sm:$0xf]
    %v202 = vld [vmem:[#allocation13 + $0x8c] sm:$0xf]
    %v203 = vld [vmem:[#allocation13 + $0xa4] sm:$0xf]
    %v204 = vld [vmem:[#allocation13 + $0xbc] sm:$0xf]
    %v205 = vld [vmem:[#allocation13 + $0xd4] sm:$0xf]
    %v206 = vld [vmem:[#allocation13 + $0xec] sm:$0xf]
    %v207 = vld [vmem:[#allocation13 + $0x104] sm:$0xf]
    %v208 = vld [vmem:[#allocation13 + $0x11c] sm:$0xf]
    %v209 = vld [vmem:[#allocation13 + $0x134] sm:$0xf]
    %v210 = vld [vmem:[#allocation13 + $0x14c] sm:$0xf]
    %v211 = vld [vmem:[#allocation13 + $0x164] sm:$0xf]
    %v212 = vld [vmem:[#allocation13 + $0x17c] sm:$0xf]
    %v213 = vld [vmem:[#allocation14] sm:$0xf]
    %v214 = vld [vmem:[#allocation14 + $0x4] sm:$0xf]
    %v215 = vld [vmem:[#allocation14 + $0x8] sm:$0xf]
    %v216 = vld [vmem:[#allocation14 + $0xc] sm:$0xf]
    %v217 = vld [vmem:[#allocation14 + $0x10] sm:$0xf]
    %v218 = vld [vmem:[#allocation14 + $0x14] sm:$0xf]
    %v219 = vld [vmem:[#allocation14 + $0x18] sm:$0xf]
    %v220 = vld [vmem:[#allocation14 + $0x1c] sm:$0xf]
    %v221 = vld [vmem:[#allocation14 + $0x20] sm:$0xf]
    %v222 = vld [vmem:[#allocation14 + $0x24] sm:$0xf]
    %v223 = vld [vmem:[#allocation14 + $0x28] sm:$0xf]
    %v224 = vld [vmem:[#allocation14 + $0x2c] sm:$0xf]
    %v225 = vld [vmem:[#allocation14 + $0x30] sm:$0xf]
    %v226 = vld [vmem:[#allocation14 + $0x34] sm:$0xf]
    %v227 = vld [vmem:[#allocation14 + $0x38] sm:$0xf]
    %v228 = vld [vmem:[#allocation14 + $0x3c] sm:$0xf]
    %v229 = vld [vmem:[#allocation16] sm:$0xf]
    %v230 = vld [vmem:[#allocation16 + $0x4] sm:$0xf]
    %v231 = vld [vmem:[#allocation16 + $0x8] sm:$0xf]
    %v232 = vld [vmem:[#allocation16 + $0xc] sm:$0xf]
    %v233 = vld [vmem:[#allocation16 + $0x10] sm:$0xf]
    %v234 = vld [vmem:[#allocation16 + $0x14] sm:$0xf]
    %v235 = vld [vmem:[#allocation16 + $0x18] sm:$0xf]
    %v236 = vld [vmem:[#allocation16 + $0x1c] sm:$0xf]
    %v237 = vld [vmem:[#allocation16 + $0x20] sm:$0xf]
    %v238 = vld [vmem:[#allocation16 + $0x24] sm:$0xf]
    %v239 = vld [vmem:[#allocation16 + $0x28] sm:$0xf]
    %v240 = vld [vmem:[#allocation16 + $0x2c] sm:$0xf]
    %v241 = vld [vmem:[#allocation16 + $0x30] sm:$0xf]
    %v242 = vld [vmem:[#allocation16 + $0x34] sm:$0xf]
    %v243 = vld [vmem:[#allocation16 + $0x38] sm:$0xf]
    %v244 = vld [vmem:[#allocation16 + $0x3c] sm:$0xf]
    %v245 = vld [vmem:[%s10] sm:$0x1]
    %v246 = vld [vmem:[%s10 + $0x1] sm:$0x1]
    %v247 = vld [vmem:[%s10 + $0x2] sm:$0x1]
    %v248 = vld [vmem:[%s10 + $0x3] sm:$0x1]
    %v249 = vld [vmem:[%s10 + $0x4] sm:$0x1]
    %v250 = vld [vmem:[%s10 + $0x5] sm:$0x1]
    %v251 = vld [vmem:[%s10 + $0x6] sm:$0x1]
    %v252 = vld [vmem:[%s10 + $0x7] sm:$0x1]
    %v253 = vld [vmem:[#allocation8] sm:$0xff]
    %v254 = vld [vmem:[#allocation8 + $0x8] sm:$0xff]
    %v255 = vld [vmem:[#allocation8 + $0x10] sm:$0xff]
    %v256 = vld [vmem:[#allocation8 + $0x18] sm:$0xff]
    %v257 = vld [vmem:[#allocation8 + $0x20] sm:$0xff]
    %v258 = vld [vmem:[#allocation8 + $0x28] sm:$0xff]
    %v259 = vld [vmem:[#allocation8 + $0x30] sm:$0xff]
    %v260 = vld [vmem:[#allocation8 + $0x38] sm:$0xff]
    %v261 = vld [vmem:[#allocation13] sm:$0xff]
    %v262 = vld [vmem:[#allocation13 + $0x8] sm:$0xf]
    %v263 = vld [vmem:[#allocation13 + $0x18] sm:$0xff]
    %v264 = vld [vmem:[#allocation13 + $0x20] sm:$0xf]
    %v265 = vld [vmem:[#allocation13 + $0x30] sm:$0xff]
    %v266 = vld [vmem:[#allocation13 + $0x38] sm:$0xf]
    %v267 = vld [vmem:[#allocation13 + $0x48] sm:$0xff]
    %v268 = vld [vmem:[#allocation13 + $0x50] sm:$0xf]
    %v269 = vld [vmem:[#allocation13 + $0x60] sm:$0xff]
    %v270 = vld [vmem:[#allocation13 + $0x68] sm:$0xf]
    %v271 = vld [vmem:[#allocation13 + $0x78] sm:$0xff]
    %v272 = vld [vmem:[#allocation13 + $0x80] sm:$0xf]
    %v273 = vld [vmem:[#allocation13 + $0x90] sm:$0xff]
    %v274 = vld [vmem:[#allocation13 + $0x98] sm:$0xf]
    %v275 = vld [vmem:[#allocation13 + $0xa8] sm:$0xff]
    %v276 = vld [vmem:[#allocation13 + $0xb0] sm:$0xf]
    %v277 = vld [vmem:[#allocation13 + $0xc0] sm:$0xff]
    %v278 = vld [vmem:[#allocation13 + $0xc8] sm:$0xf]
    %v279 = vld [vmem:[#allocation13 + $0xd8] sm:$0xff]
    %v280 = vld [vmem:[#allocation13 + $0xe0] sm:$0xf]
    %v281 = vld [vmem:[#allocation13 + $0xf0] sm:$0xff]
    %v282 = vld [vmem:[#allocation13 + $0xf8] sm:$0xf]
    %v283 = vld [vmem:[#allocation13 + $0x108] sm:$0xff]
    %v284 = vld [vmem:[#allocation13 + $0x110] sm:$0xf]
    %v285 = vld [vmem:[#allocation13 + $0x120] sm:$0xff]
    %v286 = vld [vmem:[#allocation13 + $0x128] sm:$0xf]
    %v287 = vld [vmem:[#allocation13 + $0x138] sm:$0xff]
    %v288 = vld [vmem:[#allocation13 + $0x140] sm:$0xf]
    %v289 = vld [vmem:[#allocation13 + $0x150] sm:$0xff]
    %v290 = vld [vmem:[#allocation13 + $0x158] sm:$0xf]
    %v291 = vld [vmem:[#allocation13 + $0x168] sm:$0xff]
    %v292 = vld [vmem:[#allocation13 + $0x170] sm:$0xf]
    %v325 = vunpack.c.l.b16 %v261
    %v326 = vunpack.c.h.b16 %v261
    %v327 = vunpack.c.l.b16 %v262
    %v328 = vunpack.c.l.b16 %v263
    %v329 = vunpack.c.h.b16 %v263
    %v330 = vunpack.c.l.b16 %v264
    %v331 = vunpack.c.l.b16 %v265
    %v332 = vunpack.c.h.b16 %v265
    %v333 = vunpack.c.l.b16 %v266
    %v334 = vunpack.c.l.b16 %v267
    %v335 = vunpack.c.h.b16 %v267
    %v336 = vunpack.c.l.b16 %v268
    %v337 = vunpack.c.l.b16 %v269
    %v338 = vunpack.c.h.b16 %v269
    %v339 = vunpack.c.l.b16 %v270
    %v340 = vunpack.c.l.b16 %v271
    %v341 = vunpack.c.h.b16 %v271
    %v342 = vunpack.c.l.b16 %v272
    %v343 = vunpack.c.l.b16 %v273
    %v344 = vunpack.c.h.b16 %v273
    %v345 = vunpack.c.l.b16 %v274
    %v346 = vunpack.c.l.b16 %v275
    %v347 = vunpack.c.h.b16 %v275
    %v348 = vunpack.c.l.b16 %v276
    %v349 = vunpack.c.l.b16 %v277
    %v350 = vunpack.c.h.b16 %v277
    %v351 = vunpack.c.l.b16 %v278
    %v352 = vunpack.c.l.b16 %v279
    %v353 = vunpack.c.h.b16 %v279
    %v354 = vunpack.c.l.b16 %v280
    %v355 = vunpack.c.l.b16 %v281
    %v356 = vunpack.c.h.b16 %v281
    %v357 = vunpack.c.l.b16 %v282
    %v358 = vunpack.c.l.b16 %v283
    %v359 = vunpack.c.h.b16 %v283
    %v360 = vunpack.c.l.b16 %v284
    %v361 = vunpack.c.l.b16 %v285
    %v362 = vunpack.c.h.b16 %v285
    %v363 = vunpack.c.l.b16 %v286
    %v364 = vunpack.c.l.b16 %v287
    %v365 = vunpack.c.h.b16 %v287
    %v366 = vunpack.c.l.b16 %v288
    %v367 = vunpack.c.l.b16 %v289
    %v368 = vunpack.c.h.b16 %v289
    %v369 = vunpack.c.l.b16 %v290
    %v370 = vunpack.c.l.b16 %v291
    %v371 = vunpack.c.h.b16 %v291
    %v372 = vunpack.c.l.b16 %v292
    %v373 = vpack.c.b16 %v328, %v325
    %v374 = vpack.c.b16 %v329, %v326
    %v375 = vpack.c.b16 %v330, %v327
    %v376 = vpack.c.b16 %v334, %v331
    %v377 = vpack.c.b16 %v335, %v332
    %v378 = vpack.c.b16 %v336, %v333
    %v379 = vpack.c.b16 %v340, %v337
    %v380 = vpack.c.b16 %v341, %v338
    %v381 = vpack.c.b16 %v342, %v339
    %v382 = vpack.c.b16 %v346, %v343
    %v383 = vpack.c.b16 %v347, %v344
    %v384 = vpack.c.b16 %v348, %v345
    %v385 = vpack.c.b16 %v352, %v349
    %v386 = vpack.c.b16 %v353, %v350
    %v387 = vpack.c.b16 %v354, %v351
    %v388 = vpack.c.b16 %v358, %v355
    %v389 = vpack.c.b16 %v359, %v356
    %v390 = vpack.c.b16 %v360, %v357
    %v391 = vpack.c.b16 %v364, %v361
    %v392 = vpack.c.b16 %v365, %v362
    %v393 = vpack.c.b16 %v366, %v363
    %v394 = vpack.c.b16 %v370, %v367
    %v395 = vpack.c.b16 %v371, %v368
    %v396 = vpack.c.b16 %v372, %v369
    %421 = vmatprep.subr.bf16.mxu0 %v374
    %422 = vmatpush1.bf16.msra.mxu0 %v373
    %423 = vmatprep.subr.bf16.mxu0 %v377
    %424 = vmatpush1.bf16.msra.mxu0 %v376
    %425 = vmatprep.subr.bf16.mxu0 %v380
    %426 = vmatpush1.bf16.msra.mxu0 %v379
    %427 = vmatprep.subr.bf16.mxu0 %v383
    %428 = vmatpush1.bf16.msra.mxu0 %v382
    %429 = vmatprep.subr.bf16.mxu0 %v386
    %430 = vmatpush1.bf16.msra.mxu0 %v385
    %431 = vmatprep.subr.bf16.mxu0 %v389
    %432 = vmatpush1.bf16.msra.mxu0 %v388
    %433 = vmatprep.subr.bf16.mxu0 %v392
    %434 = vmatpush1.bf16.msra.mxu0 %v391
    %435 = vmatprep.subr.bf16.mxu0 %v395
    %436 = vmatpush1.bf16.msra.mxu0 %v394
    %437 = vmatprep.subr.bf16.mxu0 0
    %438 = vmatpush1.bf16.msra.mxu0 0
    %439 = vmatprep.subr.bf16.mxu0 0
    %440 = vmatpush1.bf16.msra.mxu0 0
    %441 = vmatprep.subr.bf16.mxu0 0
    %442 = vmatpush1.bf16.msra.mxu0 0
    %443 = vmatprep.subr.bf16.mxu0 0
    %444 = vmatpush1.bf16.msra.mxu0 0
    %445 = vmatprep.subr.bf16.mxu0 0
    %446 = vmatpush1.bf16.msra.mxu0 0
    %447 = vmatprep.subr.bf16.mxu0 0
    %448 = vmatpush1.bf16.msra.mxu0 0
    %449 = vmatprep.subr.bf16.mxu0 0
    %450 = vmatpush1.bf16.msra.mxu0 0
    %451 = vmatprep.subr.bf16.mxu0 0
    %452 = vmatpush1.bf16.msra.mxu0 0
    %453 = vmatprep.mubr.bf16.mxu0 0
    %454 = vmatmul.mubr.bf16.gmra.mrb[0].mxu0 %v164
    %v455 = vpop.f32.mrb[0].mxu0
    %v456 = vadd.f32 0.0, %v455
    %v457 = vpop.f32.mrb[0].mxu0
    %v458 = vadd.f32 0.0, %v457
    %v459 = vpop.f32.mrb[0].mxu0
    %v460 = vadd.f32 0.0, %v459
    %v461 = vpop.f32.mrb[0].mxu0
    %v462 = vadd.f32 0.0, %v461
    %463 = vdwg.mxu0
    %464 = vmatprep.subr.bf16.mxu0 0
    %465 = vmatpush1.bf16.msra.mxu0 %v375
    %466 = vmatprep.subr.bf16.mxu0 0
    %467 = vmatpush1.bf16.msra.mxu0 %v378
    %468 = vmatprep.subr.bf16.mxu0 0
    %469 = vmatpush1.bf16.msra.mxu0 %v381
    %470 = vmatprep.subr.bf16.mxu0 0
    %471 = vmatpush1.bf16.msra.mxu0 %v384
    %472 = vmatprep.subr.bf16.mxu0 0
    %473 = vmatpush1.bf16.msra.mxu0 %v387
    %474 = vmatprep.subr.bf16.mxu0 0
    %475 = vmatpush1.bf16.msra.mxu0 %v390
    %476 = vmatprep.subr.bf16.mxu0 0
    %477 = vmatpush1.bf16.msra.mxu0 %v393
    %478 = vmatprep.subr.bf16.mxu0 0
    %479 = vmatpush1.bf16.msra.mxu0 %v396
    %480 = vmatprep.subr.bf16.mxu0 0
    %481 = vmatpush1.bf16.msra.mxu0 0
    %482 = vmatprep.subr.bf16.mxu0 0
    %483 = vmatpush1.bf16.msra.mxu0 0
    %484 = vmatprep.subr.bf16.mxu0 0
    %485 = vmatpush1.bf16.msra.mxu0 0
    %486 = vmatprep.subr.bf16.mxu0 0
    %487 = vmatpush1.bf16.msra.mxu0 0
    %488 = vmatprep.subr.bf16.mxu0 0
    %489 = vmatpush1.bf16.msra.mxu0 0
    %490 = vmatprep.subr.bf16.mxu0 0
    %491 = vmatpush1.bf16.msra.mxu0 0
    %492 = vmatprep.subr.bf16.mxu0 0
    %493 = vmatpush1.bf16.msra.mxu0 0
    %494 = vmatprep.subr.bf16.mxu0 0
    %495 = vmatpush1.bf16.msra.mxu0 0
    %496 = vmatprep.mubr.bf16.mxu0 0
    %497 = vmatmul.mubr.bf16.gmra.mrb[0].mxu0 %v164
    %v498 = vpop.f32.mrb[0].mxu0
    %v499 = vadd.f32 0.0, %v498
    %v500 = vpop.f32.mrb[0].mxu0
    %v501 = vpop.f32.mrb[0].mxu0
    %v502 = vadd.f32 0.0, %v501
    %v503 = vpop.f32.mrb[0].mxu0
    %504 = vdwg.mxu0
    %v505 = vpack.c.bf16 %v456, %v456
    %v506 = vpack.c.bf16 %v460, %v460
    %v507 = vmul.f32 %v458, %v253
    %v508 = vmul.f32 %v458, %v254
    %v509 = vmul.f32 %v458, %v255
    %v510 = vmul.f32 %v458, %v256
    %v511 = vmul.f32 %v458, %v257
    %v512 = vmul.f32 %v458, %v258
    %v513 = vmul.f32 %v458, %v259
    %v514 = vmul.f32 %v458, %v260
    %v515 = vmul.f32 %v462, %v253
    %v516 = vmul.f32 %v462, %v254
    %v517 = vmul.f32 %v462, %v255
    %v518 = vmul.f32 %v462, %v256
    %v519 = vmul.f32 %v462, %v257
    %v520 = vmul.f32 %v462, %v258
    %v521 = vmul.f32 %v462, %v259
    %v522 = vmul.f32 %v462, %v260
    %v523 = vpack.c.bf16 %v508, %v507
    %v524 = vpack.c.bf16 %v510, %v509
    %v525 = vpack.c.bf16 %v512, %v511
    %v526 = vpack.c.bf16 %v514, %v513
    %v527 = vpack.c.bf16 %v516, %v515
    %v528 = vpack.c.bf16 %v518, %v517
    %v529 = vpack.c.bf16 %v520, %v519
    %v530 = vpack.c.bf16 %v522, %v521
    %v531 = vmul.f32 %v499, %v253
    %v532 = vmul.f32 %v499, %v254
    %v533 = vmul.f32 %v499, %v255
    %v534 = vmul.f32 %v499, %v256
    %v535 = vmul.f32 %v499, %v257
    %v536 = vmul.f32 %v499, %v258
    %v537 = vmul.f32 %v499, %v259
    %v538 = vmul.f32 %v499, %v260
    %v539 = vmul.f32 %v502, %v253
    %v540 = vmul.f32 %v502, %v254
    %v541 = vmul.f32 %v502, %v255
    %v542 = vmul.f32 %v502, %v256
    %v543 = vmul.f32 %v502, %v257
    %v544 = vmul.f32 %v502, %v258
    %v545 = vmul.f32 %v502, %v259
    %v546 = vmul.f32 %v502, %v260
    %v547 = vpack.c.bf16 %v532, %v531
    %v548 = vpack.c.bf16 %v534, %v533
    %v549 = vpack.c.bf16 %v536, %v535
    %v550 = vpack.c.bf16 %v538, %v537
    %v551 = vpack.c.bf16 %v540, %v539
    %v552 = vpack.c.bf16 %v542, %v541
    %v553 = vpack.c.bf16 %v544, %v543
    %v554 = vpack.c.bf16 %v546, %v545
    %555 = vmatprep.subr.bf16.mxu0 0
    %556 = vmatpush1.bf16.xpose.msra.mxu0 %v523
    %557 = vmatprep.subr.bf16.mxu0 0
    %558 = vmatpush1.bf16.xpose.msra.mxu0 %v524
    %559 = vmatprep.subr.bf16.mxu0 0
    %560 = vmatpush1.bf16.xpose.msra.mxu0 %v525
    %561 = vmatprep.subr.bf16.mxu0 0
    %562 = vmatpush1.bf16.xpose.msra.mxu0 %v526
    %563 = vmatprep.subr.bf16.mxu0 0
    %564 = vmatpush1.bf16.xpose.msra.mxu0 0
    %565 = vmatprep.subr.bf16.mxu0 0
    %566 = vmatpush1.bf16.xpose.msra.mxu0 0
    %567 = vmatprep.subr.bf16.mxu0 0
    %568 = vmatpush1.bf16.xpose.msra.mxu0 0
    %569 = vmatprep.subr.bf16.mxu0 0
    %570 = vmatpush1.bf16.xpose.msra.mxu0 0
    %571 = vmatprep.subr.bf16.mxu0 0
    %572 = vmatpush1.bf16.xpose.msra.mxu0 0
    %573 = vmatprep.subr.bf16.mxu0 0
    %574 = vmatpush1.bf16.xpose.msra.mxu0 0
    %575 = vmatprep.subr.bf16.mxu0 0
    %576 = vmatpush1.bf16.xpose.msra.mxu0 0
    %577 = vmatprep.subr.bf16.mxu0 0
    %578 = vmatpush1.bf16.xpose.msra.mxu0 0
    %579 = vmatprep.subr.bf16.mxu0 0
    %580 = vmatpush1.bf16.xpose.msra.mxu0 0
    %581 = vmatprep.subr.bf16.mxu0 0
    %582 = vmatpush1.bf16.xpose.msra.mxu0 0
    %583 = vmatprep.subr.bf16.mxu0 0
    %584 = vmatpush1.bf16.xpose.msra.mxu0 0
    %585 = vmatprep.subr.bf16.mxu0 0
    %586 = vmatpush1.bf16.xpose.msra.mxu0 0
    %587 = vmatprep.mubr.bf16.mxu0 0
    %588 = vmatmul.mubr.bf16.gmra.mrb[0].mxu0 %v505
    %v589 = vpop.f32.mrb[0].mxu0
    %v590 = vadd.f32 0.0, %v589
    %v591 = vpop.f32.mrb[0].mxu0
    %v592 = vpop.f32.mrb[0].mxu0
    %v593 = vpop.f32.mrb[0].mxu0
    %594 = vdwg.mxu0
    %595 = vmatprep.subr.bf16.mxu0 0
    %596 = vmatpush1.bf16.xpose.msra.mxu0 %v527
    %597 = vmatprep.subr.bf16.mxu0 0
    %598 = vmatpush1.bf16.xpose.msra.mxu0 %v528
    %599 = vmatprep.subr.bf16.mxu0 0
    %600 = vmatpush1.bf16.xpose.msra.mxu0 %v529
    %601 = vmatprep.subr.bf16.mxu0 0
    %602 = vmatpush1.bf16.xpose.msra.mxu0 %v530
    %603 = vmatprep.subr.bf16.mxu0 0
    %604 = vmatpush1.bf16.xpose.msra.mxu0 0
    %605 = vmatprep.subr.bf16.mxu0 0
    %606 = vmatpush1.bf16.xpose.msra.mxu0 0
    %607 = vmatprep.subr.bf16.mxu0 0
    %608 = vmatpush1.bf16.xpose.msra.mxu0 0
    %609 = vmatprep.subr.bf16.mxu0 0
    %610 = vmatpush1.bf16.xpose.msra.mxu0 0
    %611 = vmatprep.subr.bf16.mxu0 0
    %612 = vmatpush1.bf16.xpose.msra.mxu0 0
    %613 = vmatprep.subr.bf16.mxu0 0
    %614 = vmatpush1.bf16.xpose.msra.mxu0 0
    %615 = vmatprep.subr.bf16.mxu0 0
    %616 = vmatpush1.bf16.xpose.msra.mxu0 0
    %617 = vmatprep.subr.bf16.mxu0 0
    %618 = vmatpush1.bf16.xpose.msra.mxu0 0
    %619 = vmatprep.subr.bf16.mxu0 0
    %620 = vmatpush1.bf16.xpose.msra.mxu0 0
    %621 = vmatprep.subr.bf16.mxu0 0
    %622 = vmatpush1.bf16.xpose.msra.mxu0 0
    %623 = vmatprep.subr.bf16.mxu0 0
    %624 = vmatpush1.bf16.xpose.msra.mxu0 0
    %625 = vmatprep.subr.bf16.mxu0 0
    %626 = vmatpush1.bf16.xpose.msra.mxu0 0
    %627 = vmatprep.mubr.bf16.mxu0 0
    %628 = vmatmul.mubr.bf16.gmra.mrb[0].mxu0 %v506
    %v629 = vpop.f32.mrb[0].mxu0
    %v630 = vadd.f32 0.0, %v629
    %v631 = vpop.f32.mrb[0].mxu0
    %v632 = vpop.f32.mrb[0].mxu0
    %v633 = vpop.f32.mrb[0].mxu0
    %634 = vdwg.mxu0
    %v635 = vmul.f32 %v590, 0.57735026
    %v636 = vmul.f32 %v630, 0.57735026
    %v637 = vld [vmem:[#allocation10] sm:$0xff]
    %v638 = vld [vmem:[#allocation10 + $0x8] sm:$0xff]
    %v639 = vld [vmem:[#allocation10 + $0x10] sm:$0xff]
    %v640 = vld [vmem:[#allocation10 + $0x18] sm:$0xff]
    %v641 = vld [vmem:[#allocation10 + $0x20] sm:$0xff]
    %v642 = vld [vmem:[#allocation10 + $0x28] sm:$0xff]
    %v643 = vld [vmem:[#allocation10 + $0x30] sm:$0xff]
    %v644 = vld [vmem:[#allocation10 + $0x38] sm:$0xff]
    %vm645 = vcmask 523264
    %v646 = vsel %vm645, %v635, -inf
    %647 = vmax.xlane.f32.xlu0 %v646
    %v648 = vpop.xlane.xlu0 %647
    %v649 = vsel %vm645, %v636, -inf
    %650 = vmax.xlane.f32.xlu0 %v649
    %v651 = vpop.xlane.xlu0 %650
    %v652 = vsub.f32 %v635, %v648
    %v653 = vsub.f32 %v636, %v651
    %v654 = vmul.f32 %v652, 1.442695
    %v655 = vpow.pop %v654
    %v656 = vmul.f32 %v653, 1.442695
    %v657 = vpow.pop %v656
    %v659 = vsel %vm645, %v655, 0
    %v662 = vsel %vm645, %v657, 0
    %664 = vmatprep.subr.mxu0 0.0
    %665 = vmatpush1.msra.mxu0 %v637
    %666 = vmatprep.subr.mxu0 0.0
    %667 = vmatpush1.msra.mxu0 %v638
    %668 = vmatprep.subr.mxu0 0.0
    %669 = vmatpush1.msra.mxu0 %v639
    %670 = vmatprep.subr.mxu0 0.0
    %671 = vmatpush1.msra.mxu0 %v640
    %672 = vmatprep.subr.mxu0 0.0
    %673 = vmatpush1.msra.mxu0 %v641
    %674 = vmatprep.subr.mxu0 0.0
    %675 = vmatpush1.msra.mxu0 %v642
    %676 = vmatprep.subr.mxu0 0.0
    %677 = vmatpush1.msra.mxu0 %v643
    %678 = vmatprep.subr.mxu0 0.0
    %679 = vmatpush1.msra.mxu0 %v644
    %680 = vmatprep.subr.mxu0 0.0
    %681 = vmatpush1.msra.mxu0 0.0
    %682 = vmatprep.subr.mxu0 0.0
    %683 = vmatpush1.msra.mxu0 0.0
    %684 = vmatprep.subr.mxu0 0.0
    %685 = vmatpush1.msra.mxu0 0.0
    %686 = vmatprep.subr.mxu0 0.0
    %687 = vmatpush1.msra.mxu0 0.0
    %688 = vmatprep.subr.mxu0 0.0
    %689 = vmatpush1.msra.mxu0 0.0
    %690 = vmatprep.subr.mxu0 0.0
    %691 = vmatpush1.msra.mxu0 0.0
    %692 = vmatprep.subr.mxu0 0.0
    %693 = vmatpush1.msra.mxu0 0.0
    %694 = vmatprep.subr.mxu0 0.0
    %695 = vmatpush1.msra.mxu0 0.0
    %696 = vmatprep.subr.mxu0 0.0
    %697 = vmatpush1.msra.mxu0 0.0
    %698 = vmatprep.subr.mxu0 0.0
    %699 = vmatpush1.msra.mxu0 0.0
    %700 = vmatprep.subr.mxu0 0.0
    %701 = vmatpush1.msra.mxu0 0.0
    %702 = vmatprep.subr.mxu0 0.0
    %703 = vmatpush1.msra.mxu0 0.0
    %704 = vmatprep.subr.mxu0 0.0
    %705 = vmatpush1.msra.mxu0 0.0
    %706 = vmatprep.subr.mxu0 0.0
    %707 = vmatpush1.msra.mxu0 0.0
    %708 = vmatprep.subr.mxu0 0.0
    %709 = vmatpush1.msra.mxu0 0.0
    %710 = vmatprep.subr.mxu0 0.0
    %711 = vmatpush1.msra.mxu0 0.0
    %712 = vmatprep.subr.mxu0 0.0
    %713 = vmatpush1.msra.mxu0 0.0
    %714 = vmatprep.subr.mxu0 0.0
    %715 = vmatpush1.msra.mxu0 0.0
    %716 = vmatprep.subr.mxu0 0.0
    %717 = vmatpush1.msra.mxu0 0.0
    %718 = vmatprep.subr.mxu0 0.0
    %719 = vmatpush1.msra.mxu0 0.0
    %720 = vmatprep.subr.mxu0 0.0
    %721 = vmatpush1.msra.mxu0 0.0
    %722 = vmatprep.subr.mxu0 0.0
    %723 = vmatpush1.msra.mxu0 0.0
    %724 = vmatprep.subr.mxu0 0.0
    %725 = vmatpush1.msra.mxu0 0.0
    %726 = vmatprep.subr.mxu0 0.0
    %727 = vmatpush1.msra.mxu0 0.0
    %728 = vmatprep.mubr.f32.mxu0 0.0
    %729 = vmatmul.mubr.f32.gmra.mrb[0].mxu0 %v659
    %v730 = vpop.f32.mrb[0].mxu0
    %v731 = vadd.f32 0.0, %v730
    %v732 = vpop.f32.mrb[0].mxu0
    %733 = vmatprep.mubr.f32.mxu0 0.0
    %734 = vmatmul.mubr.f32.gmra.mrb[0].mxu0 %v662
    %v735 = vpop.f32.mrb[0].mxu0
    %v736 = vadd.f32 0.0, %v735
    %v737 = vpop.f32.mrb[0].mxu0
    %738 = vdwg.mxu0
    %v739 = vmax.f32 %v731, 1e-30
    %v740 = vmax.f32 %v736, 1e-30
    %v741 = vrcp.pop %v739
    %v742 = vrcp.pop %v740
    %v743 = vmul.f32 %v655, %v741
    %v744 = vmul.f32 %v657, %v742
    %v745 = vpack.c.bf16 %v743, %v743
    %v746 = vpack.c.bf16 %v744, %v744
    %v748 = vsel %vm645, %v745, 0
    %750 = vmatprep.subr.bf16.mxu0 0
    %751 = vmatpush1.bf16.msra.mxu0 %v547
    %752 = vmatprep.subr.bf16.mxu0 0
    %753 = vmatpush1.bf16.msra.mxu0 %v548
    %754 = vmatprep.subr.bf16.mxu0 0
    %755 = vmatpush1.bf16.msra.mxu0 %v549
    %756 = vmatprep.subr.bf16.mxu0 0
    %757 = vmatpush1.bf16.msra.mxu0 %v550
    %758 = vmatprep.subr.bf16.mxu0 0
    %759 = vmatpush1.bf16.msra.mxu0 0
    %760 = vmatprep.subr.bf16.mxu0 0
    %761 = vmatpush1.bf16.msra.mxu0 0
    %762 = vmatprep.subr.bf16.mxu0 0
    %763 = vmatpush1.bf16.msra.mxu0 0
    %764 = vmatprep.subr.bf16.mxu0 0
    %765 = vmatpush1.bf16.msra.mxu0 0
    %766 = vmatprep.subr.bf16.mxu0 0
    %767 = vmatpush1.bf16.msra.mxu0 0
    %768 = vmatprep.subr.bf16.mxu0 0
    %769 = vmatpush1.bf16.msra.mxu0 0
    %770 = vmatprep.subr.bf16.mxu0 0
    %771 = vmatpush1.bf16.msra.mxu0 0
    %772 = vmatprep.subr.bf16.mxu0 0
    %773 = vmatpush1.bf16.msra.mxu0 0
    %774 = vmatprep.subr.bf16.mxu0 0
    %775 = vmatpush1.bf16.msra.mxu0 0
    %776 = vmatprep.subr.bf16.mxu0 0
    %777 = vmatpush1.bf16.msra.mxu0 0
    %778 = vmatprep.subr.bf16.mxu0 0
    %779 = vmatpush1.bf16.msra.mxu0 0
    %780 = vmatprep.subr.bf16.mxu0 0
    %781 = vmatpush1.bf16.msra.mxu0 0
    %782 = vmatprep.mubr.bf16.mxu0 0
    %783 = vmatmul.mubr.bf16.gmra.mrb[0].mxu0 %v748
    %v784 = vpop.f32.mrb[0].mxu0
    %v785 = vadd.f32 0.0, %v784
    %v786 = vpop.f32.mrb[0].mxu0
    %v787 = vpop.f32.mrb[0].mxu0
    %v788 = vpop.f32.mrb[0].mxu0
    %789 = vdwg.mxu0
    %v791 = vsel %vm645, %v746, 0
    %793 = vmatprep.subr.bf16.mxu0 0
    %794 = vmatpush1.bf16.msra.mxu0 %v551
    %795 = vmatprep.subr.bf16.mxu0 0
    %796 = vmatpush1.bf16.msra.mxu0 %v552
    %797 = vmatprep.subr.bf16.mxu0 0
    %798 = vmatpush1.bf16.msra.mxu0 %v553
    %799 = vmatprep.subr.bf16.mxu0 0
    %800 = vmatpush1.bf16.msra.mxu0 %v554
    %801 = vmatprep.subr.bf16.mxu0 0
    %802 = vmatpush1.bf16.msra.mxu0 0
    %803 = vmatprep.subr.bf16.mxu0 0
    %804 = vmatpush1.bf16.msra.mxu0 0
    %805 = vmatprep.subr.bf16.mxu0 0
    %806 = vmatpush1.bf16.msra.mxu0 0
    %807 = vmatprep.subr.bf16.mxu0 0
    %808 = vmatpush1.bf16.msra.mxu0 0
    %809 = vmatprep.subr.bf16.mxu0 0
    %810 = vmatpush1.bf16.msra.mxu0 0
    %811 = vmatprep.subr.bf16.mxu0 0
    %812 = vmatpush1.bf16.msra.mxu0 0
    %813 = vmatprep.subr.bf16.mxu0 0
    %814 = vmatpush1.bf16.msra.mxu0 0
    %815 = vmatprep.subr.bf16.mxu0 0
    %816 = vmatpush1.bf16.msra.mxu0 0
    %817 = vmatprep.subr.bf16.mxu0 0
    %818 = vmatpush1.bf16.msra.mxu0 0
    %819 = vmatprep.subr.bf16.mxu0 0
    %820 = vmatpush1.bf16.msra.mxu0 0
    %821 = vmatprep.subr.bf16.mxu0 0
    %822 = vmatpush1.bf16.msra.mxu0 0
    %823 = vmatprep.subr.bf16.mxu0 0
    %824 = vmatpush1.bf16.msra.mxu0 0
    %825 = vmatprep.mubr.bf16.mxu0 0
    %826 = vmatmul.mubr.bf16.gmra.mrb[0].mxu0 %v791
    %v827 = vpop.f32.mrb[0].mxu0
    %v828 = vadd.f32 0.0, %v827
    %v829 = vpop.f32.mrb[0].mxu0
    %v830 = vpop.f32.mrb[0].mxu0
    %v831 = vpop.f32.mrb[0].mxu0
    %832 = vdwg.mxu0
    %v833 = vpack.c.bf16 %v828, %v785
    %v850 = vunpack.c.l.b16 %v165
    %v851 = vunpack.c.l.b16 %v166
    %v852 = vunpack.c.l.b16 %v167
    %v853 = vunpack.c.l.b16 %v168
    %v854 = vunpack.c.l.b16 %v169
    %v855 = vunpack.c.l.b16 %v170
    %v856 = vunpack.c.l.b16 %v171
    %v857 = vunpack.c.l.b16 %v172
    %v858 = vunpack.c.l.b16 %v173
    %v859 = vunpack.c.l.b16 %v174
    %v860 = vunpack.c.l.b16 %v175
    %v861 = vunpack.c.l.b16 %v176
    %v862 = vunpack.c.l.b16 %v177
    %v863 = vunpack.c.l.b16 %v178
    %v864 = vunpack.c.l.b16 %v179
    %v865 = vunpack.c.l.b16 %v180
    %v866 = vpack.c.b16 %v851, %v850
    %v867 = vpack.c.b16 %v853, %v852
    %v868 = vpack.c.b16 %v855, %v854
    %v869 = vpack.c.b16 %v857, %v856
    %v870 = vpack.c.b16 %v859, %v858
    %v871 = vpack.c.b16 %v861, %v860
    %v872 = vpack.c.b16 %v863, %v862
    %v873 = vpack.c.b16 %v865, %v864
    %882 = vmatprep.subr.bf16.mxu0 0
    %883 = vmatpush1.bf16.msra.mxu0 %v866
    %884 = vmatprep.subr.bf16.mxu0 0
    %885 = vmatpush1.bf16.msra.mxu0 %v867
    %886 = vmatprep.subr.bf16.mxu0 0
    %887 = vmatpush1.bf16.msra.mxu0 %v868
    %888 = vmatprep.subr.bf16.mxu0 0
    %889 = vmatpush1.bf16.msra.mxu0 %v869
    %890 = vmatprep.subr.bf16.mxu0 0
    %891 = vmatpush1.bf16.msra.mxu0 %v870
    %892 = vmatprep.subr.bf16.mxu0 0
    %893 = vmatpush1.bf16.msra.mxu0 %v871
    %894 = vmatprep.subr.bf16.mxu0 0
    %895 = vmatpush1.bf16.msra.mxu0 %v872
    %896 = vmatprep.subr.bf16.mxu0 0
    %897 = vmatpush1.bf16.msra.mxu0 %v873
    %898 = vmatprep.subr.bf16.mxu0 0
    %899 = vmatpush1.bf16.msra.mxu0 0
    %900 = vmatprep.subr.bf16.mxu0 0
    %901 = vmatpush1.bf16.msra.mxu0 0
    %902 = vmatprep.subr.bf16.mxu0 0
    %903 = vmatpush1.bf16.msra.mxu0 0
    %904 = vmatprep.subr.bf16.mxu0 0
    %905 = vmatpush1.bf16.msra.mxu0 0
    %906 = vmatprep.subr.bf16.mxu0 0
    %907 = vmatpush1.bf16.msra.mxu0 0
    %908 = vmatprep.subr.bf16.mxu0 0
    %909 = vmatpush1.bf16.msra.mxu0 0
    %910 = vmatprep.subr.bf16.mxu0 0
    %911 = vmatpush1.bf16.msra.mxu0 0
    %912 = vmatprep.subr.bf16.mxu0 0
    %913 = vmatpush1.bf16.msra.mxu0 0
    %914 = vmatprep.mubr.bf16.mxu0 0
    %915 = vmatmul.mubr.bf16.gmra.mrb[0].mxu0 %v833
    %v916 = vpop.f32.mrb[0].mxu0
    %v917 = vadd.f32 %v162, %v916
    %v918 = vpop.f32.mrb[0].mxu0
    %v919 = vpop.f32.mrb[0].mxu0
    %v920 = vadd.f32 %v163, %v919
    %v921 = vpop.f32.mrb[0].mxu0
    %922 = vdwg.mxu0
    %923 = vadd.xlane.f32.xlu0 %v917
    %v924 = vpop.xlane.xlu0 %923
    %925 = vadd.xlane.f32.xlu0 %v920
    %v926 = vpop.xlane.xlu0 %925
    %v927 = vmul.f32 %v924, 0.041666668
    %v928 = vmul.f32 %v926, 0.041666668
    %v929 = vmul.f32 %v917, %v917
    %v930 = vmul.f32 %v920, %v920
    %931 = vadd.xlane.f32.xlu0 %v929
    %v932 = vpop.xlane.xlu0 %931
    %933 = vadd.xlane.f32.xlu0 %v930
    %v934 = vpop.xlane.xlu0 %933
    %v935 = vmul.f32 %v932, 0.041666668
    %v936 = vmul.f32 %v934, 0.041666668
    %v937 = vmul.f32 %v927, %v927
    %v938 = vmul.f32 %v928, %v928
    %v939 = vsub.f32 %v935, %v937
    %v940 = vsub.f32 %v936, %v938
    %v941 = vsub.f32 %v917, %v927
    %v942 = vsub.f32 %v920, %v928
    %v943 = vadd.f32 %v939, 1e-05
    %v944 = vadd.f32 %v940, 1e-05
    %v945 = vrsqrt.pop %v943
    %v946 = vrsqrt.pop %v944
    %v947 = vmul.f32 %v941, %v945
    %v948 = vmul.f32 %v942, %v946
    %v949 = vlaneseq
    %v950 = vshrl.u32 %v949, 7
    %v951 = vsub.s32 0, %v950
    %v952 = vrot.slane %v247, %v951
    %v953 = vmul.f32 %v947, %v952
    %v954 = vmul.f32 %v948, %v952
    %v955 = vlaneseq
    %v956 = vshrl.u32 %v955, 7
    %v957 = vsub.s32 0, %v956
    %v958 = vrot.slane %v248, %v957
    %v959 = vadd.f32 %v953, %v958
    %v960 = vadd.f32 %v954, %v958
    %v961 = vpack.c.bf16 %v960, %v959
    %v978 = vunpack.c.l.b16 %v181
    %v979 = vunpack.c.l.b16 %v182
    %v980 = vunpack.c.l.b16 %v183
    %v981 = vunpack.c.l.b16 %v184
    %v982 = vunpack.c.l.b16 %v185
    %v983 = vunpack.c.l.b16 %v186
    %v984 = vunpack.c.l.b16 %v187
    %v985 = vunpack.c.l.b16 %v188
    %v986 = vunpack.c.l.b16 %v189
    %v987 = vunpack.c.l.b16 %v190
    %v988 = vunpack.c.l.b16 %v191
    %v989 = vunpack.c.l.b16 %v192
    %v990 = vunpack.c.l.b16 %v193
    %v991 = vunpack.c.l.b16 %v194
    %v992 = vunpack.c.l.b16 %v195
    %v993 = vunpack.c.l.b16 %v196
    %v994 = vpack.c.b16 %v979, %v978
    %v995 = vpack.c.b16 %v981, %v980
    %v996 = vpack.c.b16 %v983, %v982
    %v997 = vpack.c.b16 %v985, %v984
    %v998 = vpack.c.b16 %v987, %v986
    %v999 = vpack.c.b16 %v989, %v988
    %v1000 = vpack.c.b16 %v991, %v990
    %v1001 = vpack.c.b16 %v993, %v992
    %1010 = vmatprep.subr.bf16.mxu0 0
    %1011 = vmatpush1.bf16.msra.mxu0 %v994
    %1012 = vmatprep.subr.bf16.mxu0 0
    %1013 = vmatpush1.bf16.msra.mxu0 %v995
    %1014 = vmatprep.subr.bf16.mxu0 0
    %1015 = vmatpush1.bf16.msra.mxu0 %v996
    %1016 = vmatprep.subr.bf16.mxu0 0
    %1017 = vmatpush1.bf16.msra.mxu0 %v997
    %1018 = vmatprep.subr.bf16.mxu0 0
    %1019 = vmatpush1.bf16.msra.mxu0 %v998
    %1020 = vmatprep.subr.bf16.mxu0 0
    %1021 = vmatpush1.bf16.msra.mxu0 %v999
    %1022 = vmatprep.subr.bf16.mxu0 0
    %1023 = vmatpush1.bf16.msra.mxu0 %v1000
    %1024 = vmatprep.subr.bf16.mxu0 0
    %1025 = vmatpush1.bf16.msra.mxu0 %v1001
    %1026 = vmatprep.subr.bf16.mxu0 0
    %1027 = vmatpush1.bf16.msra.mxu0 0
    %1028 = vmatprep.subr.bf16.mxu0 0
    %1029 = vmatpush1.bf16.msra.mxu0 0
    %1030 = vmatprep.subr.bf16.mxu0 0
    %1031 = vmatpush1.bf16.msra.mxu0 0
    %1032 = vmatprep.subr.bf16.mxu0 0
    %1033 = vmatpush1.bf16.msra.mxu0 0
    %1034 = vmatprep.subr.bf16.mxu0 0
    %1035 = vmatpush1.bf16.msra.mxu0 0
    %1036 = vmatprep.subr.bf16.mxu0 0
    %1037 = vmatpush1.bf16.msra.mxu0 0
    %1038 = vmatprep.subr.bf16.mxu0 0
    %1039 = vmatpush1.bf16.msra.mxu0 0
    %1040 = vmatprep.subr.bf16.mxu0 0
    %1041 = vmatpush1.bf16.msra.mxu0 0
    %1042 = vmatprep.mubr.bf16.mxu0 0
    %1043 = vmatmul.mubr.bf16.gmra.mrb[0].mxu0 %v961
    %v1044 = vpop.f32.mrb[0].mxu0
    %v1045 = vadd.f32 0.0, %v1044
    %v1046 = vpop.f32.mrb[0].mxu0
    %v1047 = vpop.f32.mrb[0].mxu0
    %v1048 = vadd.f32 0.0, %v1047
    %v1049 = vpop.f32.mrb[0].mxu0
    %1050 = vdwg.mxu0
    %v1051 = vpack.c.bf16 %v1045, %v1045
    %v1052 = vpack.c.bf16 %v1048, %v1048
    %v1053 = vld [vmem:[#allocation5] sm:$0xf]
    %v1054 = vld [vmem:[#allocation5 + $0x4] sm:$0xf]
    %v1055 = vld [vmem:[#allocation5 + $0x8] sm:$0xf]
    %v1056 = vld [vmem:[#allocation5 + $0xc] sm:$0xf]
    %v1057 = vld [vmem:[#allocation5 + $0x10] sm:$0xf]
    %v1058 = vld [vmem:[#allocation5 + $0x14] sm:$0xf]
    %v1059 = vld [vmem:[#allocation5 + $0x18] sm:$0xf]
    %v1060 = vld [vmem:[#allocation5 + $0x1c] sm:$0xf]
    %v1061 = vld [vmem:[#allocation5 + $0x20] sm:$0xf]
    %v1062 = vld [vmem:[#allocation5 + $0x24] sm:$0xf]
    %v1063 = vld [vmem:[#allocation5 + $0x28] sm:$0xf]
    %v1064 = vld [vmem:[#allocation5 + $0x2c] sm:$0xf]
    %v1065 = vld [vmem:[#allocation5 + $0x30] sm:$0xf]
    %v1066 = vld [vmem:[#allocation5 + $0x34] sm:$0xf]
    %v1067 = vld [vmem:[#allocation5 + $0x38] sm:$0xf]
    %v1068 = vld [vmem:[#allocation5 + $0x3c] sm:$0xf]
    %v1069 = vld [vmem:[#allocation5 + $0x40] sm:$0xf]
    %v1070 = vld [vmem:[#allocation5 + $0x44] sm:$0xf]
    %v1071 = vld [vmem:[#allocation5 + $0x48] sm:$0xf]
    %v1072 = vld [vmem:[#allocation5 + $0x4c] sm:$0xf]
    %v1073 = vld [vmem:[#allocation5 + $0x50] sm:$0xf]
    %v1074 = vld [vmem:[#allocation5 + $0x54] sm:$0xf]
    %v1075 = vld [vmem:[#allocation5 + $0x58] sm:$0xf]
    %v1076 = vld [vmem:[#allocation5 + $0x5c] sm:$0xf]
    %v1077 = vld [vmem:[#allocation5 + $0x60] sm:$0xf]
    %v1078 = vld [vmem:[#allocation5 + $0x64] sm:$0xf]
    %v1079 = vld [vmem:[#allocation5 + $0x68] sm:$0xf]
    %v1080 = vld [vmem:[#allocation5 + $0x6c] sm:$0xf]
    %v1081 = vld [vmem:[#allocation5 + $0x70] sm:$0xf]
    %v1082 = vld [vmem:[#allocation5 + $0x74] sm:$0xf]
    %v1083 = vld [vmem:[#allocation5 + $0x78] sm:$0xf]
    %v1084 = vld [vmem:[#allocation5 + $0x7c] sm:$0xf]
    %v1101 = vunpack.c.l.b16 %v1053
    %v1102 = vunpack.c.l.b16 %v1054
    %v1103 = vunpack.c.l.b16 %v1055
    %v1104 = vunpack.c.l.b16 %v1056
    %v1105 = vunpack.c.l.b16 %v1057
    %v1106 = vunpack.c.l.b16 %v1058
    %v1107 = vunpack.c.l.b16 %v1059
    %v1108 = vunpack.c.l.b16 %v1060
    %v1109 = vunpack.c.l.b16 %v1061
    %v1110 = vunpack.c.l.b16 %v1062
    %v1111 = vunpack.c.l.b16 %v1063
    %v1112 = vunpack.c.l.b16 %v1064
    %v1113 = vunpack.c.l.b16 %v1065
    %v1114 = vunpack.c.l.b16 %v1066
    %v1115 = vunpack.c.l.b16 %v1067
    %v1116 = vunpack.c.l.b16 %v1068
    %v1117 = vpack.c.b16 %v1102, %v1101
    %v1118 = vpack.c.b16 %v1104, %v1103
    %v1119 = vpack.c.b16 %v1106, %v1105
    %v1120 = vpack.c.b16 %v1108, %v1107
    %v1121 = vpack.c.b16 %v1110, %v1109
    %v1122 = vpack.c.b16 %v1112, %v1111
    %v1123 = vpack.c.b16 %v1114, %v1113
    %v1124 = vpack.c.b16 %v1116, %v1115
    %1133 = vmatprep.subr.bf16.mxu0 0
    %1134 = vmatpush1.bf16.msra.mxu0 %v1117
    %1135 = vmatprep.subr.bf16.mxu0 0
    %1136 = vmatpush1.bf16.msra.mxu0 %v1118
    %1137 = vmatprep.subr.bf16.mxu0 0
    %1138 = vmatpush1.bf16.msra.mxu0 %v1119
    %1139 = vmatprep.subr.bf16.mxu0 0
    %1140 = vmatpush1.bf16.msra.mxu0 %v1120
    %1141 = vmatprep.subr.bf16.mxu0 0
    %1142 = vmatpush1.bf16.msra.mxu0 %v1121
    %1143 = vmatprep.subr.bf16.mxu0 0
    %1144 = vmatpush1.bf16.msra.mxu0 %v1122
    %1145 = vmatprep.subr.bf16.mxu0 0
    %1146 = vmatpush1.bf16.msra.mxu0 %v1123
    %1147 = vmatprep.subr.bf16.mxu0 0
    %1148 = vmatpush1.bf16.msra.mxu0 %v1124
    %1149 = vmatprep.subr.bf16.mxu0 0
    %1150 = vmatpush1.bf16.msra.mxu0 0
    %1151 = vmatprep.subr.bf16.mxu0 0
    %1152 = vmatpush1.bf16.msra.mxu0 0
    %1153 = vmatprep.subr.bf16.mxu0 0
    %1154 = vmatpush1.bf16.msra.mxu0 0
    %1155 = vmatprep.subr.bf16.mxu0 0
    %1156 = vmatpush1.bf16.msra.mxu0 0
    %1157 = vmatprep.subr.bf16.mxu0 0
    %1158 = vmatpush1.bf16.msra.mxu0 0
    %1159 = vmatprep.subr.bf16.mxu0 0
    %1160 = vmatpush1.bf16.msra.mxu0 0
    %1161 = vmatprep.subr.bf16.mxu0 0
    %1162 = vmatpush1.bf16.msra.mxu0 0
    %1163 = vmatprep.subr.bf16.mxu0 0
    %1164 = vmatpush1.bf16.msra.mxu0 0
    %1165 = vmatprep.mubr.bf16.mxu0 0
    %1166 = vmatmul.mubr.bf16.gmra.mrb[0].mxu0 %v1051
    %v1167 = vpop.f32.mrb[0].mxu0
    %v1168 = vadd.f32 0.0, %v1167
    %v1169 = vpop.f32.mrb[0].mxu0
    %v1170 = vpop.f32.mrb[0].mxu0
    %v1171 = vpop.f32.mrb[0].mxu0
    %1172 = vdwg.mxu0
    %v1189 = vunpack.c.l.b16 %v1069
    %v1190 = vunpack.c.l.b16 %v1070
    %v1191 = vunpack.c.l.b16 %v1071
    %v1192 = vunpack.c.l.b16 %v1072
    %v1193 = vunpack.c.l.b16 %v1073
    %v1194 = vunpack.c.l.b16 %v1074
    %v1195 = vunpack.c.l.b16 %v1075
    %v1196 = vunpack.c.l.b16 %v1076
    %v1197 = vunpack.c.l.b16 %v1077
    %v1198 = vunpack.c.l.b16 %v1078
    %v1199 = vunpack.c.l.b16 %v1079
    %v1200 = vunpack.c.l.b16 %v1080
    %v1201 = vunpack.c.l.b16 %v1081
    %v1202 = vunpack.c.l.b16 %v1082
    %v1203 = vunpack.c.l.b16 %v1083
    %v1204 = vunpack.c.l.b16 %v1084
    %v1205 = vpack.c.b16 %v1190, %v1189
    %v1206 = vpack.c.b16 %v1192, %v1191
    %v1207 = vpack.c.b16 %v1194, %v1193
    %v1208 = vpack.c.b16 %v1196, %v1195
    %v1209 = vpack.c.b16 %v1198, %v1197
    %v1210 = vpack.c.b16 %v1200, %v1199
    %v1211 = vpack.c.b16 %v1202, %v1201
    %v1212 = vpack.c.b16 %v1204, %v1203
    %1221 = vmatprep.subr.bf16.mxu0 0
    %1222 = vmatpush1.bf16.msra.mxu0 %v1205
    %1223 = vmatprep.subr.bf16.mxu0 0
    %1224 = vmatpush1.bf16.msra.mxu0 %v1206
    %1225 = vmatprep.subr.bf16.mxu0 0
    %1226 = vmatpush1.bf16.msra.mxu0 %v1207
    %1227 = vmatprep.subr.bf16.mxu0 0
    %1228 = vmatpush1.bf16.msra.mxu0 %v1208
    %1229 = vmatprep.subr.bf16.mxu0 0
    %1230 = vmatpush1.bf16.msra.mxu0 %v1209
    %1231 = vmatprep.subr.bf16.mxu0 0
    %1232 = vmatpush1.bf16.msra.mxu0 %v1210
    %1233 = vmatprep.subr.bf16.mxu0 0
    %1234 = vmatpush1.bf16.msra.mxu0 %v1211
    %1235 = vmatprep.subr.bf16.mxu0 0
    %1236 = vmatpush1.bf16.msra.mxu0 %v1212
    %1237 = vmatprep.subr.bf16.mxu0 0
    %1238 = vmatpush1.bf16.msra.mxu0 0
    %1239 = vmatprep.subr.bf16.mxu0 0
    %1240 = vmatpush1.bf16.msra.mxu0 0
    %1241 = vmatprep.subr.bf16.mxu0 0
    %1242 = vmatpush1.bf16.msra.mxu0 0
    %1243 = vmatprep.subr.bf16.mxu0 0
    %1244 = vmatpush1.bf16.msra.mxu0 0
    %1245 = vmatprep.subr.bf16.mxu0 0
    %1246 = vmatpush1.bf16.msra.mxu0 0
    %1247 = vmatprep.subr.bf16.mxu0 0
    %1248 = vmatpush1.bf16.msra.mxu0 0
    %1249 = vmatprep.subr.bf16.mxu0 0
    %1250 = vmatpush1.bf16.msra.mxu0 0
    %1251 = vmatprep.subr.bf16.mxu0 0
    %1252 = vmatpush1.bf16.msra.mxu0 0
    %1253 = vmatprep.mubr.bf16.mxu0 0
    %1254 = vmatmul.mubr.bf16.gmra.mrb[0].mxu0 %v1052
    %v1255 = vpop.f32.mrb[0].mxu0
    %v1256 = vadd.f32 0.0, %v1255
    %v1257 = vpop.f32.mrb[0].mxu0
    %v1258 = vpop.f32.mrb[0].mxu0
    %v1259 = vpop.f32.mrb[0].mxu0
    %1260 = vdwg.mxu0
    %v1261 = vmul.f32 %v1168, 0.57735026
    %v1262 = vmul.f32 %v1256, 0.57735026
    %v1263 = vld [vmem:[%s3] sm:$0x1]
    %v1264 = vld [vmem:[%s3 + $0x1] sm:$0x1]
    %v1267 = vlaneseq
    %v1268 = vshrl.u32 %v1267, 7
    %v1269 = vsub.s32 0, %v1268
    %v1270 = vrot.slane %v1263, %v1269
    %v1271 = vlaneseq
    %v1272 = vshrl.u32 %v1271, 7
    %v1273 = vsub.s32 0, %v1272
    %v1274 = vrot.slane %v1264, %v1273
    %v1277 = vadd.f32 %v1261, %v1270
    %v1278 = vadd.f32 %v1262, %v1274
    %v1279 = vld [vmem:[#allocation11] sm:$0xff]
    %v1280 = vld [vmem:[#allocation11 + $0x8] sm:$0xff]
    %v1281 = vld [vmem:[#allocation11 + $0x10] sm:$0xff]
    %v1282 = vld [vmem:[#allocation11 + $0x18] sm:$0xff]
    %v1283 = vld [vmem:[#allocation11 + $0x20] sm:$0xff]
    %v1284 = vld [vmem:[#allocation11 + $0x28] sm:$0xff]
    %v1285 = vld [vmem:[#allocation11 + $0x30] sm:$0xff]
    %v1286 = vld [vmem:[#allocation11 + $0x38] sm:$0xff]
    %v1287 = vld [vmem:[#allocation11 + $0x40] sm:$0xff]
    %v1288 = vld [vmem:[#allocation11 + $0x48] sm:$0xff]
    %v1289 = vld [vmem:[#allocation11 + $0x50] sm:$0xff]
    %v1290 = vld [vmem:[#allocation11 + $0x58] sm:$0xff]
    %v1291 = vld [vmem:[#allocation11 + $0x60] sm:$0xff]
    %v1292 = vld [vmem:[#allocation11 + $0x68] sm:$0xff]
    %v1293 = vld [vmem:[#allocation11 + $0x70] sm:$0xff]
    %v1294 = vld [vmem:[#allocation11 + $0x78] sm:$0xff]
    %1295 = vmax.xlane.f32.xlu0 %v1277
    %v1296 = vpop.xlane.xlu0 %1295
    %1297 = vmax.xlane.f32.xlu0 %v1278
    %v1298 = vpop.xlane.xlu0 %1297
    %v1299 = vsub.f32 %v1277, %v1296
    %v1300 = vsub.f32 %v1278, %v1298
    %v1301 = vmul.f32 %v1299, 1.442695
    %v1302 = vpow.pop %v1301
    %v1303 = vmul.f32 %v1300, 1.442695
    %v1304 = vpow.pop %v1303
    %1305 = vmatprep.subr.mxu0 0.0
    %1306 = vmatpush1.msra.mxu0 %v1279
    %1307 = vmatprep.subr.mxu0 0.0
    %1308 = vmatpush1.msra.mxu0 %v1280
    %1309 = vmatprep.subr.mxu0 0.0
    %1310 = vmatpush1.msra.mxu0 %v1281
    %1311 = vmatprep.subr.mxu0 0.0
    %1312 = vmatpush1.msra.mxu0 %v1282
    %1313 = vmatprep.subr.mxu0 0.0
    %1314 = vmatpush1.msra.mxu0 %v1283
    %1315 = vmatprep.subr.mxu0 0.0
    %1316 = vmatpush1.msra.mxu0 %v1284
    %1317 = vmatprep.subr.mxu0 0.0
    %1318 = vmatpush1.msra.mxu0 %v1285
    %1319 = vmatprep.subr.mxu0 0.0
    %1320 = vmatpush1.msra.mxu0 %v1286
    %1321 = vmatprep.subr.mxu0 0.0
    %1322 = vmatpush1.msra.mxu0 %v1287
    %1323 = vmatprep.subr.mxu0 0.0
    %1324 = vmatpush1.msra.mxu0 %v1288
    %1325 = vmatprep.subr.mxu0 0.0
    %1326 = vmatpush1.msra.mxu0 %v1289
    %1327 = vmatprep.subr.mxu0 0.0
    %1328 = vmatpush1.msra.mxu0 %v1290
    %1329 = vmatprep.subr.mxu0 0.0
    %1330 = vmatpush1.msra.mxu0 %v1291
    %1331 = vmatprep.subr.mxu0 0.0
    %1332 = vmatpush1.msra.mxu0 %v1292
    %1333 = vmatprep.subr.mxu0 0.0
    %1334 = vmatpush1.msra.mxu0 %v1293
    %1335 = vmatprep.subr.mxu0 0.0
    %1336 = vmatpush1.msra.mxu0 %v1294
    %1337 = vmatprep.subr.mxu0 0.0
    %1338 = vmatpush1.msra.mxu0 0.0
    %1339 = vmatprep.subr.mxu0 0.0
    %1340 = vmatpush1.msra.mxu0 0.0
    %1341 = vmatprep.subr.mxu0 0.0
    %1342 = vmatpush1.msra.mxu0 0.0
    %1343 = vmatprep.subr.mxu0 0.0
    %1344 = vmatpush1.msra.mxu0 0.0
    %1345 = vmatprep.subr.mxu0 0.0
    %1346 = vmatpush1.msra.mxu0 0.0
    %1347 = vmatprep.subr.mxu0 0.0
    %1348 = vmatpush1.msra.mxu0 0.0
    %1349 = vmatprep.subr.mxu0 0.0
    %1350 = vmatpush1.msra.mxu0 0.0
    %1351 = vmatprep.subr.mxu0 0.0
    %1352 = vmatpush1.msra.mxu0 0.0
    %1353 = vmatprep.subr.mxu0 0.0
    %1354 = vmatpush1.msra.mxu0 0.0
    %1355 = vmatprep.subr.mxu0 0.0
    %1356 = vmatpush1.msra.mxu0 0.0
    %1357 = vmatprep.subr.mxu0 0.0
    %1358 = vmatpush1.msra.mxu0 0.0
    %1359 = vmatprep.subr.mxu0 0.0
    %1360 = vmatpush1.msra.mxu0 0.0
    %1361 = vmatprep.subr.mxu0 0.0
    %1362 = vmatpush1.msra.mxu0 0.0
    %1363 = vmatprep.subr.mxu0 0.0
    %1364 = vmatpush1.msra.mxu0 0.0
    %1365 = vmatprep.subr.mxu0 0.0
    %1366 = vmatpush1.msra.mxu0 0.0
    %1367 = vmatprep.subr.mxu0 0.0
    %1368 = vmatpush1.msra.mxu0 0.0
    %1369 = vmatprep.mubr.f32.mxu0 0.0
    %1370 = vmatmul.mubr.f32.gmra.mrb[0].mxu0 %v1302
    %v1371 = vpop.f32.mrb[0].mxu0
    %v1372 = vadd.f32 0.0, %v1371
    %v1373 = vpop.f32.mrb[0].mxu0
    %1374 = vmatprep.mubr.f32.mxu0 0.0
    %1375 = vmatmul.mubr.f32.gmra.mrb[0].mxu0 %v1304
    %v1376 = vpop.f32.mrb[0].mxu0
    %v1377 = vadd.f32 0.0, %v1376
    %v1378 = vpop.f32.mrb[0].mxu0
    %1379 = vdwg.mxu0
    %v1380 = vmax.f32 %v1372, 1e-30
    %v1381 = vmax.f32 %v1377, 1e-30
    %v1382 = vrcp.pop %v1380
    %v1383 = vrcp.pop %v1381
    %v1384 = vmul.f32 %v1302, %v1382
    %v1385 = vmul.f32 %v1304, %v1383
    %v1386 = vpack.c.bf16 %v1384, %v1384
    %v1387 = vpack.c.bf16 %v1385, %v1385
    %v1388 = vld [vmem:[#allocation7] sm:$0xf]
    %v1389 = vld [vmem:[#allocation7 + $0x4] sm:$0xf]
    %v1390 = vld [vmem:[#allocation7 + $0x8] sm:$0xf]
    %v1391 = vld [vmem:[#allocation7 + $0xc] sm:$0xf]
    %v1392 = vld [vmem:[#allocation7 + $0x10] sm:$0xf]
    %v1393 = vld [vmem:[#allocation7 + $0x14] sm:$0xf]
    %v1394 = vld [vmem:[#allocation7 + $0x18] sm:$0xf]
    %v1395 = vld [vmem:[#allocation7 + $0x1c] sm:$0xf]
    %v1396 = vld [vmem:[#allocation7 + $0x20] sm:$0xf]
    %v1397 = vld [vmem:[#allocation7 + $0x24] sm:$0xf]
    %v1398 = vld [vmem:[#allocation7 + $0x28] sm:$0xf]
    %v1399 = vld [vmem:[#allocation7 + $0x2c] sm:$0xf]
    %v1400 = vld [vmem:[#allocation7 + $0x30] sm:$0xf]
    %v1401 = vld [vmem:[#allocation7 + $0x34] sm:$0xf]
    %v1402 = vld [vmem:[#allocation7 + $0x38] sm:$0xf]
    %v1403 = vld [vmem:[#allocation7 + $0x3c] sm:$0xf]
    %v1404 = vld [vmem:[#allocation7 + $0x40] sm:$0xf]
    %v1405 = vld [vmem:[#allocation7 + $0x44] sm:$0xf]
    %v1406 = vld [vmem:[#allocation7 + $0x48] sm:$0xf]
    %v1407 = vld [vmem:[#allocation7 + $0x4c] sm:$0xf]
    %v1408 = vld [vmem:[#allocation7 + $0x50] sm:$0xf]
    %v1409 = vld [vmem:[#allocation7 + $0x54] sm:$0xf]
    %v1410 = vld [vmem:[#allocation7 + $0x58] sm:$0xf]
    %v1411 = vld [vmem:[#allocation7 + $0x5c] sm:$0xf]
    %v1412 = vld [vmem:[#allocation7 + $0x60] sm:$0xf]
    %v1413 = vld [vmem:[#allocation7 + $0x64] sm:$0xf]
    %v1414 = vld [vmem:[#allocation7 + $0x68] sm:$0xf]
    %v1415 = vld [vmem:[#allocation7 + $0x6c] sm:$0xf]
    %v1416 = vld [vmem:[#allocation7 + $0x70] sm:$0xf]
    %v1417 = vld [vmem:[#allocation7 + $0x74] sm:$0xf]
    %v1418 = vld [vmem:[#allocation7 + $0x78] sm:$0xf]
    %v1419 = vld [vmem:[#allocation7 + $0x7c] sm:$0xf]
    %v1436 = vunpack.c.l.b16 %v1388
    %v1437 = vunpack.c.l.b16 %v1389
    %v1438 = vunpack.c.l.b16 %v1390
    %v1439 = vunpack.c.l.b16 %v1391
    %v1440 = vunpack.c.l.b16 %v1392
    %v1441 = vunpack.c.l.b16 %v1393
    %v1442 = vunpack.c.l.b16 %v1394
    %v1443 = vunpack.c.l.b16 %v1395
    %v1444 = vunpack.c.l.b16 %v1396
    %v1445 = vunpack.c.l.b16 %v1397
    %v1446 = vunpack.c.l.b16 %v1398
    %v1447 = vunpack.c.l.b16 %v1399
    %v1448 = vunpack.c.l.b16 %v1400
    %v1449 = vunpack.c.l.b16 %v1401
    %v1450 = vunpack.c.l.b16 %v1402
    %v1451 = vunpack.c.l.b16 %v1403
    %v1452 = vpack.c.b16 %v1437, %v1436
    %v1453 = vpack.c.b16 %v1439, %v1438
    %v1454 = vpack.c.b16 %v1441, %v1440
    %v1455 = vpack.c.b16 %v1443, %v1442
    %v1456 = vpack.c.b16 %v1445, %v1444
    %v1457 = vpack.c.b16 %v1447, %v1446
    %v1458 = vpack.c.b16 %v1449, %v1448
    %v1459 = vpack.c.b16 %v1451, %v1450
    %1468 = vmatprep.subr.bf16.mxu0 0
    %1469 = vmatpush1.bf16.msra.mxu0 %v1452
    %1470 = vmatprep.subr.bf16.mxu0 0
    %1471 = vmatpush1.bf16.msra.mxu0 %v1453
    %1472 = vmatprep.subr.bf16.mxu0 0
    %1473 = vmatpush1.bf16.msra.mxu0 %v1454
    %1474 = vmatprep.subr.bf16.mxu0 0
    %1475 = vmatpush1.bf16.msra.mxu0 %v1455
    %1476 = vmatprep.subr.bf16.mxu0 0
    %1477 = vmatpush1.bf16.msra.mxu0 %v1456
    %1478 = vmatprep.subr.bf16.mxu0 0
    %1479 = vmatpush1.bf16.msra.mxu0 %v1457
    %1480 = vmatprep.subr.bf16.mxu0 0
    %1481 = vmatpush1.bf16.msra.mxu0 %v1458
    %1482 = vmatprep.subr.bf16.mxu0 0
    %1483 = vmatpush1.bf16.msra.mxu0 %v1459
    %1484 = vmatprep.subr.bf16.mxu0 0
    %1485 = vmatpush1.bf16.msra.mxu0 0
    %1486 = vmatprep.subr.bf16.mxu0 0
    %1487 = vmatpush1.bf16.msra.mxu0 0
    %1488 = vmatprep.subr.bf16.mxu0 0
    %1489 = vmatpush1.bf16.msra.mxu0 0
    %1490 = vmatprep.subr.bf16.mxu0 0
    %1491 = vmatpush1.bf16.msra.mxu0 0
    %1492 = vmatprep.subr.bf16.mxu0 0
    %1493 = vmatpush1.bf16.msra.mxu0 0
    %1494 = vmatprep.subr.bf16.mxu0 0
    %1495 = vmatpush1.bf16.msra.mxu0 0
    %1496 = vmatprep.subr.bf16.mxu0 0
    %1497 = vmatpush1.bf16.msra.mxu0 0
    %1498 = vmatprep.subr.bf16.mxu0 0
    %1499 = vmatpush1.bf16.msra.mxu0 0
    %1500 = vmatprep.mubr.bf16.mxu0 0
    %1501 = vmatmul.mubr.bf16.gmra.mrb[0].mxu0 %v1386
    %v1502 = vpop.f32.mrb[0].mxu0
    %v1503 = vadd.f32 0.0, %v1502
    %v1504 = vpop.f32.mrb[0].mxu0
    %v1505 = vpop.f32.mrb[0].mxu0
    %v1506 = vpop.f32.mrb[0].mxu0
    %1507 = vdwg.mxu0
    %v1524 = vunpack.c.l.b16 %v1404
    %v1525 = vunpack.c.l.b16 %v1405
    %v1526 = vunpack.c.l.b16 %v1406
    %v1527 = vunpack.c.l.b16 %v1407
    %v1528 = vunpack.c.l.b16 %v1408
    %v1529 = vunpack.c.l.b16 %v1409
    %v1530 = vunpack.c.l.b16 %v1410
    %v1531 = vunpack.c.l.b16 %v1411
    %v1532 = vunpack.c.l.b16 %v1412
    %v1533 = vunpack.c.l.b16 %v1413
    %v1534 = vunpack.c.l.b16 %v1414
    %v1535 = vunpack.c.l.b16 %v1415
    %v1536 = vunpack.c.l.b16 %v1416
    %v1537 = vunpack.c.l.b16 %v1417
    %v1538 = vunpack.c.l.b16 %v1418
    %v1539 = vunpack.c.l.b16 %v1419
    %v1540 = vpack.c.b16 %v1525, %v1524
    %v1541 = vpack.c.b16 %v1527, %v1526
    %v1542 = vpack.c.b16 %v1529, %v1528
    %v1543 = vpack.c.b16 %v1531, %v1530
    %v1544 = vpack.c.b16 %v1533, %v1532
    %v1545 = vpack.c.b16 %v1535, %v1534
    %v1546 = vpack.c.b16 %v1537, %v1536
    %v1547 = vpack.c.b16 %v1539, %v1538
    %1556 = vmatprep.subr.bf16.mxu0 0
    %1557 = vmatpush1.bf16.msra.mxu0 %v1540
    %1558 = vmatprep.subr.bf16.mxu0 0
    %1559 = vmatpush1.bf16.msra.mxu0 %v1541
    %1560 = vmatprep.subr.bf16.mxu0 0
    %1561 = vmatpush1.bf16.msra.mxu0 %v1542
    %1562 = vmatprep.subr.bf16.mxu0 0
    %1563 = vmatpush1.bf16.msra.mxu0 %v1543
    %1564 = vmatprep.subr.bf16.mxu0 0
    %1565 = vmatpush1.bf16.msra.mxu0 %v1544
    %1566 = vmatprep.subr.bf16.mxu0 0
    %1567 = vmatpush1.bf16.msra.mxu0 %v1545
    %1568 = vmatprep.subr.bf16.mxu0 0
    %1569 = vmatpush1.bf16.msra.mxu0 %v1546
    %1570 = vmatprep.subr.bf16.mxu0 0
    %1571 = vmatpush1.bf16.msra.mxu0 %v1547
    %1572 = vmatprep.subr.bf16.mxu0 0
    %1573 = vmatpush1.bf16.msra.mxu0 0
    %1574 = vmatprep.subr.bf16.mxu0 0
    %1575 = vmatpush1.bf16.msra.mxu0 0
    %1576 = vmatprep.subr.bf16.mxu0 0
    %1577 = vmatpush1.bf16.msra.mxu0 0
    %1578 = vmatprep.subr.bf16.mxu0 0
    %1579 = vmatpush1.bf16.msra.mxu0 0
    %1580 = vmatprep.subr.bf16.mxu0 0
    %1581 = vmatpush1.bf16.msra.mxu0 0
    %1582 = vmatprep.subr.bf16.mxu0 0
    %1583 = vmatpush1.bf16.msra.mxu0 0
    %1584 = vmatprep.subr.bf16.mxu0 0
    %1585 = vmatpush1.bf16.msra.mxu0 0
    %1586 = vmatprep.subr.bf16.mxu0 0
    %1587 = vmatpush1.bf16.msra.mxu0 0
    %1588 = vmatprep.mubr.bf16.mxu0 0
    %1589 = vmatmul.mubr.bf16.gmra.mrb[0].mxu0 %v1387
    %v1590 = vpop.f32.mrb[0].mxu0
    %v1591 = vadd.f32 0.0, %v1590
    %v1592 = vpop.f32.mrb[0].mxu0
    %v1593 = vpop.f32.mrb[0].mxu0
    %v1594 = vpop.f32.mrb[0].mxu0
    %1595 = vdwg.mxu0
    %v1596 = vpack.c.bf16 %v1591, %v1503
    %v1613 = vunpack.c.l.b16 %v197
    %v1614 = vunpack.c.l.b16 %v198
    %v1615 = vunpack.c.l.b16 %v199
    %v1616 = vunpack.c.l.b16 %v200
    %v1617 = vunpack.c.l.b16 %v201
    %v1618 = vunpack.c.l.b16 %v202
    %v1619 = vunpack.c.l.b16 %v203
    %v1620 = vunpack.c.l.b16 %v204
    %v1621 = vunpack.c.l.b16 %v205
    %v1622 = vunpack.c.l.b16 %v206
    %v1623 = vunpack.c.l.b16 %v207
    %v1624 = vunpack.c.l.b16 %v208
    %v1625 = vunpack.c.l.b16 %v209
    %v1626 = vunpack.c.l.b16 %v210
    %v1627 = vunpack.c.l.b16 %v211
    %v1628 = vunpack.c.l.b16 %v212
    %v1629 = vpack.c.b16 %v1614, %v1613
    %v1630 = vpack.c.b16 %v1616, %v1615
    %v1631 = vpack.c.b16 %v1618, %v1617
    %v1632 = vpack.c.b16 %v1620, %v1619
    %v1633 = vpack.c.b16 %v1622, %v1621
    %v1634 = vpack.c.b16 %v1624, %v1623
    %v1635 = vpack.c.b16 %v1626, %v1625
    %v1636 = vpack.c.b16 %v1628, %v1627
    %1645 = vmatprep.subr.bf16.mxu0 0
    %1646 = vmatpush1.bf16.msra.mxu0 %v1629
    %1647 = vmatprep.subr.bf16.mxu0 0
    %1648 = vmatpush1.bf16.msra.mxu0 %v1630
    %1649 = vmatprep.subr.bf16.mxu0 0
    %1650 = vmatpush1.bf16.msra.mxu0 %v1631
    %1651 = vmatprep.subr.bf16.mxu0 0
    %1652 = vmatpush1.bf16.msra.mxu0 %v1632
    %1653 = vmatprep.subr.bf16.mxu0 0
    %1654 = vmatpush1.bf16.msra.mxu0 %v1633
    %1655 = vmatprep.subr.bf16.mxu0 0
    %1656 = vmatpush1.bf16.msra.mxu0 %v1634
    %1657 = vmatprep.subr.bf16.mxu0 0
    %1658 = vmatpush1.bf16.msra.mxu0 %v1635
    %1659 = vmatprep.subr.bf16.mxu0 0
    %1660 = vmatpush1.bf16.msra.mxu0 %v1636
    %1661 = vmatprep.subr.bf16.mxu0 0
    %1662 = vmatpush1.bf16.msra.mxu0 0
    %1663 = vmatprep.subr.bf16.mxu0 0
    %1664 = vmatpush1.bf16.msra.mxu0 0
    %1665 = vmatprep.subr.bf16.mxu0 0
    %1666 = vmatpush1.bf16.msra.mxu0 0
    %1667 = vmatprep.subr.bf16.mxu0 0
    %1668 = vmatpush1.bf16.msra.mxu0 0
    %1669 = vmatprep.subr.bf16.mxu0 0
    %1670 = vmatpush1.bf16.msra.mxu0 0
    %1671 = vmatprep.subr.bf16.mxu0 0
    %1672 = vmatpush1.bf16.msra.mxu0 0
    %1673 = vmatprep.subr.bf16.mxu0 0
    %1674 = vmatpush1.bf16.msra.mxu0 0
    %1675 = vmatprep.subr.bf16.mxu0 0
    %1676 = vmatpush1.bf16.msra.mxu0 0
    %1677 = vmatprep.mubr.bf16.mxu0 0
    %1678 = vmatmul.mubr.bf16.gmra.mrb[0].mxu0 %v1596
    %v1679 = vpop.f32.mrb[0].mxu0
    %v1680 = vadd.f32 %v959, %v1679
    %v1681 = vpop.f32.mrb[0].mxu0
    %v1682 = vpop.f32.mrb[0].mxu0
    %v1683 = vadd.f32 %v960, %v1682
    %v1684 = vpop.f32.mrb[0].mxu0
    %1685 = vdwg.mxu0
    %1686 = vadd.xlane.f32.xlu0 %v1680
    %v1687 = vpop.xlane.xlu0 %1686
    %1688 = vadd.xlane.f32.xlu0 %v1683
    %v1689 = vpop.xlane.xlu0 %1688
    %v1690 = vmul.f32 %v1687, 0.041666668
    %v1691 = vmul.f32 %v1689, 0.041666668
    %v1692 = vmul.f32 %v1680, %v1680
    %v1693 = vmul.f32 %v1683, %v1683
    %1694 = vadd.xlane.f32.xlu0 %v1692
    %v1695 = vpop.xlane.xlu0 %1694
    %1696 = vadd.xlane.f32.xlu0 %v1693
    %v1697 = vpop.xlane.xlu0 %1696
    %v1698 = vmul.f32 %v1695, 0.041666668
    %v1699 = vmul.f32 %v1697, 0.041666668
    %v1700 = vmul.f32 %v1690, %v1690
    %v1701 = vmul.f32 %v1691, %v1691
    %v1702 = vsub.f32 %v1698, %v1700
    %v1703 = vsub.f32 %v1699, %v1701
    %v1704 = vsub.f32 %v1680, %v1690
    %v1705 = vsub.f32 %v1683, %v1691
    %v1706 = vadd.f32 %v1702, 1e-05
    %v1707 = vadd.f32 %v1703, 1e-05
    %v1708 = vrsqrt.pop %v1706
    %v1709 = vrsqrt.pop %v1707
    %v1710 = vmul.f32 %v1704, %v1708
    %v1711 = vmul.f32 %v1705, %v1709
    %v1712 = vlaneseq
    %v1713 = vshrl.u32 %v1712, 7
    %v1714 = vsub.s32 0, %v1713
    %v1715 = vrot.slane %v249, %v1714
    %v1716 = vmul.f32 %v1710, %v1715
    %v1717 = vmul.f32 %v1711, %v1715
    %v1718 = vlaneseq
    %v1719 = vshrl.u32 %v1718, 7
    %v1720 = vsub.s32 0, %v1719
    %v1721 = vrot.slane %v250, %v1720
    %v1722 = vadd.f32 %v1716, %v1721
    %v1723 = vadd.f32 %v1717, %v1721
    %v1724 = vpack.c.bf16 %v1723, %v1722
    %v1725 = vlaneseq
    %v1726 = vshrl.u32 %v1725, 7
    %v1727 = vsub.s32 0, %v1726
    %v1728 = vrot.slane %v245, %v1727
    %v1745 = vunpack.c.l.b16 %v213
    %v1746 = vunpack.c.l.b16 %v214
    %v1747 = vunpack.c.l.b16 %v215
    %v1748 = vunpack.c.l.b16 %v216
    %v1749 = vunpack.c.l.b16 %v217
    %v1750 = vunpack.c.l.b16 %v218
    %v1751 = vunpack.c.l.b16 %v219
    %v1752 = vunpack.c.l.b16 %v220
    %v1753 = vunpack.c.l.b16 %v221
    %v1754 = vunpack.c.l.b16 %v222
    %v1755 = vunpack.c.l.b16 %v223
    %v1756 = vunpack.c.l.b16 %v224
    %v1757 = vunpack.c.l.b16 %v225
    %v1758 = vunpack.c.l.b16 %v226
    %v1759 = vunpack.c.l.b16 %v227
    %v1760 = vunpack.c.l.b16 %v228
    %v1761 = vpack.c.b16 %v1746, %v1745
    %v1762 = vpack.c.b16 %v1748, %v1747
    %v1763 = vpack.c.b16 %v1750, %v1749
    %v1764 = vpack.c.b16 %v1752, %v1751
    %v1765 = vpack.c.b16 %v1754, %v1753
    %v1766 = vpack.c.b16 %v1756, %v1755
    %v1767 = vpack.c.b16 %v1758, %v1757
    %v1768 = vpack.c.b16 %v1760, %v1759
    %1777 = vmatprep.subr.bf16.mxu0 0
    %1778 = vmatpush1.bf16.msra.mxu0 %v1761
    %1779 = vmatprep.subr.bf16.mxu0 0
    %1780 = vmatpush1.bf16.msra.mxu0 %v1762
    %1781 = vmatprep.subr.bf16.mxu0 0
    %1782 = vmatpush1.bf16.msra.mxu0 %v1763
    %1783 = vmatprep.subr.bf16.mxu0 0
    %1784 = vmatpush1.bf16.msra.mxu0 %v1764
    %1785 = vmatprep.subr.bf16.mxu0 0
    %1786 = vmatpush1.bf16.msra.mxu0 %v1765
    %1787 = vmatprep.subr.bf16.mxu0 0
    %1788 = vmatpush1.bf16.msra.mxu0 %v1766
    %1789 = vmatprep.subr.bf16.mxu0 0
    %1790 = vmatpush1.bf16.msra.mxu0 %v1767
    %1791 = vmatprep.subr.bf16.mxu0 0
    %1792 = vmatpush1.bf16.msra.mxu0 %v1768
    %1793 = vmatprep.subr.bf16.mxu0 0
    %1794 = vmatpush1.bf16.msra.mxu0 0
    %1795 = vmatprep.subr.bf16.mxu0 0
    %1796 = vmatpush1.bf16.msra.mxu0 0
    %1797 = vmatprep.subr.bf16.mxu0 0
    %1798 = vmatpush1.bf16.msra.mxu0 0
    %1799 = vmatprep.subr.bf16.mxu0 0
    %1800 = vmatpush1.bf16.msra.mxu0 0
    %1801 = vmatprep.subr.bf16.mxu0 0
    %1802 = vmatpush1.bf16.msra.mxu0 0
    %1803 = vmatprep.subr.bf16.mxu0 0
    %1804 = vmatpush1.bf16.msra.mxu0 0
    %1805 = vmatprep.subr.bf16.mxu0 0
    %1806 = vmatpush1.bf16.msra.mxu0 0
    %1807 = vmatprep.subr.bf16.mxu0 0
    %1808 = vmatpush1.bf16.msra.mxu0 0
    %1809 = vmatprep.mubr.bf16.mxu0 0
    %1810 = vmatmul.mubr.bf16.gmra.mrb[0].mxu0 %v1724
    %v1811 = vpop.f32.mrb[0].mxu0
    %v1812 = vadd.f32 %v1728, %v1811
    %v1813 = vpop.f32.mrb[0].mxu0
    %v1814 = vpop.f32.mrb[0].mxu0
    %v1815 = vadd.f32 %v1728, %v1814
    %v1816 = vpop.f32.mrb[0].mxu0
    %1817 = vdwg.mxu0
    %v1818 = vmax.f32 %v1812, 0.0
    %v1819 = vmax.f32 %v1815, 0.0
    %v1820 = vpack.c.bf16 %v1819, %v1818
    %v1821 = vlaneseq
    %v1822 = vshrl.u32 %v1821, 7
    %v1823 = vsub.s32 0, %v1822
    %v1824 = vrot.slane %v246, %v1823
    %v1841 = vunpack.c.l.b16 %v229
    %v1842 = vunpack.c.l.b16 %v230
    %v1843 = vunpack.c.l.b16 %v231
    %v1844 = vunpack.c.l.b16 %v232
    %v1845 = vunpack.c.l.b16 %v233
    %v1846 = vunpack.c.l.b16 %v234
    %v1847 = vunpack.c.l.b16 %v235
    %v1848 = vunpack.c.l.b16 %v236
    %v1849 = vunpack.c.l.b16 %v237
    %v1850 = vunpack.c.l.b16 %v238
    %v1851 = vunpack.c.l.b16 %v239
    %v1852 = vunpack.c.l.b16 %v240
    %v1853 = vunpack.c.l.b16 %v241
    %v1854 = vunpack.c.l.b16 %v242
    %v1855 = vunpack.c.l.b16 %v243
    %v1856 = vunpack.c.l.b16 %v244
    %v1857 = vpack.c.b16 %v1842, %v1841
    %v1858 = vpack.c.b16 %v1844, %v1843
    %v1859 = vpack.c.b16 %v1846, %v1845
    %v1860 = vpack.c.b16 %v1848, %v1847
    %v1861 = vpack.c.b16 %v1850, %v1849
    %v1862 = vpack.c.b16 %v1852, %v1851
    %v1863 = vpack.c.b16 %v1854, %v1853
    %v1864 = vpack.c.b16 %v1856, %v1855
    %1873 = vmatprep.subr.bf16.mxu0 0
    %1874 = vmatpush1.bf16.msra.mxu0 %v1857
    %1875 = vmatprep.subr.bf16.mxu0 0
    %1876 = vmatpush1.bf16.msra.mxu0 %v1858
    %1877 = vmatprep.subr.bf16.mxu0 0
    %1878 = vmatpush1.bf16.msra.mxu0 %v1859
    %1879 = vmatprep.subr.bf16.mxu0 0
    %1880 = vmatpush1.bf16.msra.mxu0 %v1860
    %1881 = vmatprep.subr.bf16.mxu0 0
    %1882 = vmatpush1.bf16.msra.mxu0 %v1861
    %1883 = vmatprep.subr.bf16.mxu0 0
    %1884 = vmatpush1.bf16.msra.mxu0 %v1862
    %1885 = vmatprep.subr.bf16.mxu0 0
    %1886 = vmatpush1.bf16.msra.mxu0 %v1863
    %1887 = vmatprep.subr.bf16.mxu0 0
    %1888 = vmatpush1.bf16.msra.mxu0 %v1864
    %1889 = vmatprep.subr.bf16.mxu0 0
    %1890 = vmatpush1.bf16.msra.mxu0 0
    %1891 = vmatprep.subr.bf16.mxu0 0
    %1892 = vmatpush1.bf16.msra.mxu0 0
    %1893 = vmatprep.subr.bf16.mxu0 0
    %1894 = vmatpush1.bf16.msra.mxu0 0
    %1895 = vmatprep.subr.bf16.mxu0 0
    %1896 = vmatpush1.bf16.msra.mxu0 0
    %1897 = vmatprep.subr.bf16.mxu0 0
    %1898 = vmatpush1.bf16.msra.mxu0 0
    %1899 = vmatprep.subr.bf16.mxu0 0
    %1900 = vmatpush1.bf16.msra.mxu0 0
    %1901 = vmatprep.subr.bf16.mxu0 0
    %1902 = vmatpush1.bf16.msra.mxu0 0
    %1903 = vmatprep.subr.bf16.mxu0 0
    %1904 = vmatpush1.bf16.msra.mxu0 0
    %1905 = vmatprep.mubr.bf16.mxu0 0
    %1906 = vmatmul.mubr.bf16.gmra.mrb[0].mxu0 %v1820
    %v1907 = vpop.f32.mrb[0].mxu0
    %v1908 = vadd.f32 %v1824, %v1907
    %v1909 = vpop.f32.mrb[0].mxu0
    %v1910 = vpop.f32.mrb[0].mxu0
    %v1911 = vadd.f32 %v1824, %v1910
    %v1912 = vpop.f32.mrb[0].mxu0
    %1913 = vdwg.mxu0
    %v1914 = vadd.f32 %v1908, %v1722
    %v1915 = vadd.f32 %v1911, %v1723
    %1916 = vadd.xlane.f32.xlu0 %v1914
    %v1917 = vpop.xlane.xlu0 %1916
    %1918 = vadd.xlane.f32.xlu0 %v1915
    %v1919 = vpop.xlane.xlu0 %1918
    %v1920 = vmul.f32 %v1917, 0.041666668
    %v1921 = vmul.f32 %v1919, 0.041666668
    %v1922 = vmul.f32 %v1914, %v1914
    %v1923 = vmul.f32 %v1915, %v1915
    %1924 = vadd.xlane.f32.xlu0 %v1922
    %v1925 = vpop.xlane.xlu0 %1924
    %1926 = vadd.xlane.f32.xlu0 %v1923
    %v1927 = vpop.xlane.xlu0 %1926
    %v1928 = vmul.f32 %v1925, 0.041666668
    %v1929 = vmul.f32 %v1927, 0.041666668
    %v1930 = vmul.f32 %v1920, %v1920
    %v1931 = vmul.f32 %v1921, %v1921
    %v1932 = vsub.f32 %v1928, %v1930
    %v1933 = vsub.f32 %v1929, %v1931
    %v1934 = vsub.f32 %v1914, %v1920
    %v1935 = vsub.f32 %v1915, %v1921
    %v1936 = vadd.f32 %v1932, 1e-05
    %v1937 = vadd.f32 %v1933, 1e-05
    %v1938 = vrsqrt.pop %v1936
    %v1939 = vrsqrt.pop %v1937
    %v1940 = vmul.f32 %v1934, %v1938
    %v1941 = vmul.f32 %v1935, %v1939
    %v1942 = vlaneseq
    %v1943 = vshrl.u32 %v1942, 7
    %v1944 = vsub.s32 0, %v1943
    %v1945 = vrot.slane %v251, %v1944
    %v1946 = vmul.f32 %v1940, %v1945
    %v1947 = vmul.f32 %v1941, %v1945
    %v1948 = vlaneseq
    %v1949 = vshrl.u32 %v1948, 7
    %v1950 = vsub.s32 0, %v1949
    %v1951 = vrot.slane %v252, %v1950
    %v1952 = vadd.f32 %v1946, %v1951
    %v1953 = vadd.f32 %v1947, %v1951
    %v1954 = vpack.c.bf16 %v1952, %v1952
    %v1955 = vpack.c.bf16 %v1953, %v1953
    %1956 = vst [vmem:[#allocation17] sm:$0xf] %v1954
    %1957 = vst [vmem:[#allocation17 + $0x4] sm:$0xf] %v1955
    // Predicated region
    $region82: #{tpu_custom_call.1} parent=1 // pred_check
      _
    $region83: #{tpu_custom_call.1} parent=1 // pred_check_branch
      %1959 = sbr.rel (0) target = $region85
    $region84: #{tpu_custom_call.1} parent=1 // pred_region
      %s1961 = ssub.s32 128, 128
      %1962 = vsyncadd [#allocation4], %s1961
      %s1963 = sshll.u32 [#allocation17], 4
      %s1964 = int_to_ptr.vmem [resolvable:$true] %s1963
      %1969 = dma.vmem_to_hbm [thread:$0]  %s1964, 128, %s11, [#allocation4], 64, 64, 4
    $region85: #{tpu_custom_call.1} parent=1 // pred_fallthru
      _
    // Predicated region
    $region86: #{tpu_custom_call.1} parent=1 // pred_check
      _
    $region87: #{tpu_custom_call.1} parent=1 // pred_check_branch
      %1971 = sbr.rel (0) target = $region89
    $region88: #{tpu_custom_call.1} parent=1 // pred_region
      %1972 = dma.done [#allocation4], 128
    $region89: #{tpu_custom_call.1} parent=1 // pred_fallthru
      _
    %1973 = vsyncpa [#allocation3], 1
    %1974 = vsyncpa [#allocation6], 1
    %1975 = vsyncpa [#allocation9], 1
    %1976 = vsyncpa [#allocation12], 1
    %1977 = vsyncpa [#allocation15], 1
    %1978 = vsyncpa [#allocation4], 1

</llo_original>
